<compile_context>
chip_gen: v7x
topology: tpu7x:2x2x1
jax: 0.10.0
libtpu: 0.0.40
codegen_flags: <defaults>
</compile_context>

<pallas_src>
import functools

import jax
import jax.numpy as jnp
from jax.experimental import pallas as pl
from jax.experimental.pallas import tpu as pltpu

# ---------------- small synthetic CLIP-text config ----------------
VOCAB = 64          # vocab size (eos token = VOCAB - 1)
SEQ = 8             # max_position_embeddings / sequence length
D = 32              # hidden size
HEADS = 4
DH = D // HEADS     # head dim
FF = 4 * D          # intermediate size
LAYERS = 2
PROJ = 16           # projection_dim (text feature dim)
EPS = 1e-5
NEG = -1e9


# ---------------- in-kernel helpers ----------------
def _layer_norm(x, g, b):
    # f32 throughout (v5e has no bf16 VPU/EUP path).
    mu = jnp.mean(x, axis=-1, keepdims=True)
    xc = x - mu
    var = jnp.mean(xc * xc, axis=-1, keepdims=True)
    return xc * jax.lax.rsqrt(var + EPS) * g + b


def _matmul_bf16(x, w):
    # bf16 MXU operands, f32 accumulation.
    return jnp.dot(x.astype(jnp.bfloat16), w.astype(jnp.bfloat16),
                   preferred_element_type=jnp.float32)


# ---------------- fused encoder kernel ----------------
def clip_text_encoder_kernel(
        h0_ref, pad_ref, eos_ref,
        ln1g_ref, ln1b_ref, wqkv_ref, bqkv_ref, wo_ref, bo_ref,
        ln2g_ref, ln2b_ref, w1_ref, b1_ref, w2_ref, b2_ref,
        lnfg_ref, lnfb_ref, projw_ref,
        out_ref,
        h_scr,
        *, batch, seq, dim, heads, head_dim):
    layer = pl.program_id(0)
    n_layers = pl.num_programs(0)
    scale = head_dim ** -0.5

    # Load the embeddings into the resident VMEM hidden-state buffer once.
    @pl.when(layer == 0)
    def _():
        h_scr[...] = h0_ref[...]

    h = h_scr[...]                                            # (B*S, D) f32

    # ---------- self-attention block (pre-LN) ----------
    hn = _layer_norm(h, ln1g_ref[0], ln1b_ref[0])

    # fused Q/K/V projection: one (B*S, D) @ (D, 3D) matmul
    qkv = _matmul_bf16(hn, wqkv_ref[0]) + bqkv_ref[0]         # (B*S, 3D) f32

    # additive mask built in-kernel: causal (iota) + padding bias (f32)
    row = jax.lax.broadcasted_iota(jnp.int32, (seq, seq), 0)
    col = jax.lax.broadcasted_iota(jnp.int32, (seq, seq), 1)
    causal = jnp.where(col <= row, 0.0, NEG)                  # (S, S)
    bias = causal[None, :, :] + pad_ref[...][:, None, :]      # (B, S, S)

    q = qkv[:, :dim].reshape(batch, seq, dim)
    k = qkv[:, dim:2 * dim].reshape(batch, seq, dim)
    v = qkv[:, 2 * dim:].reshape(batch, seq, dim)

    wo = wo_ref[0]                                            # (D, D)

    # per-head attention, all batches at once (static unroll over heads).
    # Each head's context is pushed through its own sublane-aligned row-slice of
    # W_o and accumulated in f32 -- identical to concat(ctx_h) @ W_o, but with no
    # lane concatenation and no narrow masked VMEM stores.
    o = jnp.zeros((batch * seq, dim), jnp.float32)
    for hh in range(heads):
        lo, hi = hh * head_dim, (hh + 1) * head_dim
        qh = q[:, :, lo:hi].astype(jnp.bfloat16)              # (B, S, Dh)
        kh = k[:, :, lo:hi].astype(jnp.bfloat16)
        vh = v[:, :, lo:hi].astype(jnp.bfloat16)
        s = jnp.einsum("bqd,bkd->bqk", qh, kh,
                       preferred_element_type=jnp.float32) * scale + bias
        s = s - jnp.max(s, axis=-1, keepdims=True)            # stable softmax (f32)
        p = jnp.exp(s)
        p = p * pl.reciprocal(jnp.sum(p, axis=-1, keepdims=True), approx=True)
        ctx = jnp.einsum("bqk,bkd->bqd", p.astype(jnp.bfloat16), vh,
                         preferred_element_type=jnp.float32)  # (B, S, Dh)
        o = o + jnp.dot(ctx.reshape(batch * seq, head_dim).astype(jnp.bfloat16),
                        wo[lo:hi, :].astype(jnp.bfloat16),
                        preferred_element_type=jnp.float32)

    h = h + o + bo_ref[0]

    # ---------- MLP block (pre-LN, quick_gelu) ----------
    hn2 = _layer_norm(h, ln2g_ref[0], ln2b_ref[0])
    f = _matmul_bf16(hn2, w1_ref[0]) + b1_ref[0]
    f = f * jax.nn.sigmoid(1.702 * f)                         # quick_gelu, f32
    f = _matmul_bf16(f, w2_ref[0]) + b2_ref[0]
    h = h + f

    h_scr[...] = h                                            # carry to next layer

    # ---------- EOS pooling + final LN + text projection (last layer only) ----------
    @pl.when(layer == n_layers - 1)
    def _():
        # exact row selection via one-hot matmul (f32 -> exact); LN commutes with
        # row selection, so pool first and normalize only (B, D) rows.
        pooled = jnp.dot(eos_ref[...], h,
                         preferred_element_type=jnp.float32)  # (B, D)
        pooled = _layer_norm(pooled, lnfg_ref[...], lnfb_ref[...])
        # text_projection has no bias
        out_ref[...] = jnp.dot(pooled.astype(jnp.bfloat16),
                               projw_ref[...].astype(jnp.bfloat16),
                               preferred_element_type=jnp.float32)


# ---------------- parameter init (deterministic, synthetic) ----------------
def init_params(key):
    def nrm(k, shape, scale=0.02):
        return scale * jax.random.normal(k, shape, dtype=jnp.float32)

    keys = jax.random.split(key, 4 + LAYERS)
    params = {
        "tok_emb": nrm(keys[0], (VOCAB, D)),
        "pos_emb": nrm(keys[1], (SEQ, D)),
        "lnf_g": jnp.ones((1, D), jnp.float32),
        "lnf_b": jnp.zeros((1, D), jnp.float32),
        "proj_w": nrm(keys[2], (D, PROJ)),   # text_projection (no bias)
        "layers": [],
    }
    for li in range(LAYERS):
        lk = jax.random.split(keys[4 + li], 8)
        layer = {
            "ln1_g": jnp.ones((1, D), jnp.float32),
            "ln1_b": jnp.zeros((1, D), jnp.float32),
            "wq": nrm(lk[0], (D, D)), "bq": jnp.zeros((1, D), jnp.float32),
            "wk": nrm(lk[1], (D, D)), "bk": jnp.zeros((1, D), jnp.float32),
            "wv": nrm(lk[2], (D, D)), "bv": jnp.zeros((1, D), jnp.float32),
            "wo": nrm(lk[3], (D, D)), "bo": jnp.zeros((1, D), jnp.float32),
            "ln2_g": jnp.ones((1, D), jnp.float32),
            "ln2_b": jnp.zeros((1, D), jnp.float32),
            "w1": nrm(lk[4], (D, FF)), "b1": jnp.zeros((1, FF), jnp.float32),
            "w2": nrm(lk[5], (FF, D)), "b2": jnp.zeros((1, D), jnp.float32),
        }
        params["layers"].append(layer)
    return params


# ---------------- forward (CLIP get_text_features + eval dropout) ----------------
def clip_text_features(params, input_ids, attention_mask):
    B, S = input_ids.shape

    # --- plain-JAX glue: embedding gather, padding bias, EOS one-hot ---
    h0 = (params["tok_emb"][input_ids]
          + params["pos_emb"][None, :S, :]).reshape(B * S, D)            # (B*S, D)
    pad = (1.0 - attention_mask.astype(jnp.float32)) * NEG               # (B, S)
    eos_idx = jnp.argmax(input_ids, axis=-1)                             # (B,) CLIP pooling
    rows = jnp.arange(B) * S + eos_idx
    eos_onehot = (jnp.arange(B * S)[None, :] == rows[:, None]).astype(jnp.float32)

    # --- stack per-layer weights so the kernel streams them by grid index ---
    layers = params["layers"]
    stack = lambda name: jnp.stack([lp[name] for lp in layers])
    wqkv = jnp.stack([jnp.concatenate([lp["wq"], lp["wk"], lp["wv"]], axis=1)
                      for lp in layers])                                 # (L, D, 3D)
    bqkv = jnp.stack([jnp.concatenate([lp["bq"], lp["bk"], lp["bv"]], axis=1)
                      for lp in layers])                                 # (L, 1, 3D)
    ln1_g, ln1_b = stack("ln1_g"), stack("ln1_b")                        # (L, 1, D)
    wo_s, bo_s = stack("wo"), stack("bo")
    ln2_g, ln2_b = stack("ln2_g"), stack("ln2_b")
    w1_s, b1_s = stack("w1"), stack("b1")
    w2_s, b2_s = stack("w2"), stack("b2")

    kern = functools.partial(clip_text_encoder_kernel,
                             batch=B, seq=S, dim=D, heads=HEADS, head_dim=DH)

    per_layer = lambda a: pl.BlockSpec((1,) + a.shape[1:], lambda l: (l, 0, 0))
    shared = lambda a: pl.BlockSpec(a.shape, lambda l, n=a.ndim: (0,) * n)

    inputs = (h0, pad, eos_onehot,
              ln1_g, ln1_b, wqkv, bqkv, wo_s, bo_s, ln2_g, ln2_b,
              w1_s, b1_s, w2_s, b2_s,
              params["lnf_g"], params["lnf_b"], params["proj_w"])
    in_specs = ([shared(h0), shared(pad), shared(eos_onehot)]
                + [per_layer(a) for a in (ln1_g, ln1_b, wqkv, bqkv, wo_s, bo_s,
                                          ln2_g, ln2_b, w1_s, b1_s, w2_s, b2_s)]
                + [shared(params["lnf_g"]), shared(params["lnf_b"]),
                   shared(params["proj_w"])])

    text_emb = pl.pallas_call(
        kern,
        out_shape=jax.ShapeDtypeStruct((B, PROJ), jnp.float32),
        grid=(LAYERS,),
        in_specs=in_specs,
        out_specs=pl.BlockSpec((B, PROJ), lambda l: (0, 0)),
        scratch_shapes=[pltpu.VMEM((B * S, D), jnp.float32)],   # resident hidden state
        compiler_params=pltpu.CompilerParams(
            # layers carry state in VMEM scratch -> must stay sequential
            dimension_semantics=("arbitrary",)),
    )(*inputs)

    # dropout: identity in eval mode
    return text_emb


if __name__ == "__main__":
    key = jax.random.PRNGKey(0)
    pkey, ikey = jax.random.split(key)
    params = init_params(pkey)

    B = 2
    eos_id = VOCAB - 1
    # random token ids in [1, VOCAB-2]; place eos; pad batch-1 with two zeros
    input_ids = jax.random.randint(ikey, (B, SEQ), 1, VOCAB - 1, dtype=jnp.int32)
    input_ids = input_ids.at[0, SEQ - 1].set(eos_id)
    input_ids = input_ids.at[1, SEQ - 3].set(eos_id)
    input_ids = input_ids.at[1, SEQ - 2].set(0)
    input_ids = input_ids.at[1, SEQ - 1].set(0)
    attention_mask = jnp.ones((B, SEQ), jnp.int32)
    attention_mask = attention_mask.at[1, SEQ - 2:].set(0)

    fwd = jax.jit(clip_text_features)
    out = jax.block_until_ready(fwd(params, input_ids, attention_mask))
    assert out.shape == (B, PROJ) and out.dtype == jnp.float32
    assert bool(jnp.all(jnp.isfinite(out)))
    print("KERNEL_OK")
</pallas_src>

<mosaic_0001>
module attributes {stable_mosaic.version = 11 : i64} {
  func.func @clip_text_encoder_kernel(%arg0: i32, %arg1: memref<16x32xf32, #tpu.memory_space<vmem>>, %arg2: memref<2x8xf32, #tpu.memory_space<vmem>>, %arg3: memref<2x16xf32, #tpu.memory_space<vmem>>, %arg4: memref<1x1x32xf32, #tpu.memory_space<vmem>>, %arg5: memref<1x1x32xf32, #tpu.memory_space<vmem>>, %arg6: memref<1x32x96xf32, #tpu.memory_space<vmem>>, %arg7: memref<1x1x96xf32, #tpu.memory_space<vmem>>, %arg8: memref<1x32x32xf32, #tpu.memory_space<vmem>>, %arg9: memref<1x1x32xf32, #tpu.memory_space<vmem>>, %arg10: memref<1x1x32xf32, #tpu.memory_space<vmem>>, %arg11: memref<1x1x32xf32, #tpu.memory_space<vmem>>, %arg12: memref<1x32x128xf32, #tpu.memory_space<vmem>>, %arg13: memref<1x1x128xf32, #tpu.memory_space<vmem>>, %arg14: memref<1x128x32xf32, #tpu.memory_space<vmem>>, %arg15: memref<1x1x32xf32, #tpu.memory_space<vmem>>, %arg16: memref<1x32xf32, #tpu.memory_space<vmem>>, %arg17: memref<1x32xf32, #tpu.memory_space<vmem>>, %arg18: memref<32x16xf32, #tpu.memory_space<vmem>>, %arg19: memref<2x16xf32, #tpu.memory_space<vmem>>, %arg20: memref<16x32xf32, #tpu.memory_space<vmem>>) attributes {dimension_semantics = [#tpu.dimension_semantics<arbitrary>], iteration_bounds = array<i64: 2>, scalar_prefetch = 0 : i64, scratch_operands = 1 : i64, tpu.core_type = #tpu.core_type<tc>, window_params = [{pipeline_mode = #tpu.pipeline_mode<synchronous>, transform_indices = @transform_0, window_bounds = array<i64: 16, 32>}, {pipeline_mode = #tpu.pipeline_mode<synchronous>, transform_indices = @transform_1, window_bounds = array<i64: 2, 8>}, {pipeline_mode = #tpu.pipeline_mode<synchronous>, transform_indices = @transform_2, window_bounds = array<i64: 2, 16>}, {transform_indices = @transform_3, window_bounds = array<i64: 1, 1, 32>}, {transform_indices = @transform_4, window_bounds = array<i64: 1, 1, 32>}, {transform_indices = @transform_5, window_bounds = array<i64: 1, 32, 96>}, {transform_indices = @transform_6, window_bounds = array<i64: 1, 1, 96>}, {transform_indices = @transform_7, window_bounds = array<i64: 1, 32, 32>}, {transform_indices = @transform_8, window_bounds = array<i64: 1, 1, 32>}, {transform_indices = @transform_9, window_bounds = array<i64: 1, 1, 32>}, {transform_indices = @transform_10, window_bounds = array<i64: 1, 1, 32>}, {transform_indices = @transform_11, window_bounds = array<i64: 1, 32, 128>}, {transform_indices = @transform_12, window_bounds = array<i64: 1, 1, 128>}, {transform_indices = @transform_13, window_bounds = array<i64: 1, 128, 32>}, {transform_indices = @transform_14, window_bounds = array<i64: 1, 1, 32>}, {pipeline_mode = #tpu.pipeline_mode<synchronous>, transform_indices = @transform_15, window_bounds = array<i64: 1, 32>}, {pipeline_mode = #tpu.pipeline_mode<synchronous>, transform_indices = @transform_16, window_bounds = array<i64: 1, 32>}, {pipeline_mode = #tpu.pipeline_mode<synchronous>, transform_indices = @transform_17, window_bounds = array<i64: 32, 16>}, {pipeline_mode = #tpu.pipeline_mode<synchronous>, transform_indices = @transform_18, window_bounds = array<i64: 2, 16>}]} {
    %c0_i32 = arith.constant 0 : i32
    %0 = arith.cmpi eq, %arg0, %c0_i32 : i32
    %1 = arith.extui %0 : i1 to i32
    %c0_i32_0 = arith.constant 0 : i32
    %2 = arith.cmpi ne, %1, %c0_i32_0 : i32
    scf.if %2 {
      %c0_84 = arith.constant 0 : index
      %c0_85 = arith.constant 0 : index
      %230 = vector.load %arg1[%c0_84, %c0_85] : memref<16x32xf32, #tpu.memory_space<vmem>>, vector<16x32xf32>
      %c0_86 = arith.constant 0 : index
      %c0_87 = arith.constant 0 : index
      %231 = vector.load %arg20[%c0_86, %c0_87] : memref<16x32xf32, #tpu.memory_space<vmem>>, vector<16x32xf32>
      tpu.vector_store %arg20[%c0_86, %c0_87], %230 {strides = array<i32>} : memref<16x32xf32, #tpu.memory_space<vmem>>, vector<16x32xf32>,
    } else {
    }
    %c0 = arith.constant 0 : index
    %c0_1 = arith.constant 0 : index
    %3 = vector.load %arg20[%c0, %c0_1] : memref<16x32xf32, #tpu.memory_space<vmem>>, vector<16x32xf32>
    %c0_2 = arith.constant 0 : index
    %c0_3 = arith.constant 0 : index
    %c0_4 = arith.constant 0 : index
    %4 = vector.load %arg4[%c0_2, %c0_3, %c0_4] : memref<1x1x32xf32, #tpu.memory_space<vmem>>, vector<1x1x32xf32>
    %5 = vector.shape_cast %4 : vector<1x1x32xf32> to vector<1x32xf32>
    %c0_5 = arith.constant 0 : index
    %c0_6 = arith.constant 0 : index
    %c0_7 = arith.constant 0 : index
    %6 = vector.load %arg5[%c0_5, %c0_6, %c0_7] : memref<1x1x32xf32, #tpu.memory_space<vmem>>, vector<1x1x32xf32>
    %7 = vector.shape_cast %6 : vector<1x1x32xf32> to vector<1x32xf32>
    %cst = arith.constant dense<0.000000e+00> : vector<16xf32>
    %8 = vector.multi_reduction <add>, %3, %cst [1] : vector<16x32xf32> to vector<16xf32>
    %9 = vector.shape_cast %8 : vector<16xf32> to vector<16x1xf32>
    %cst_8 = arith.constant 3.200000e+01 : f32
    %10 = vector.broadcast %cst_8 : f32 to vector<16x1xf32>
    %11 = arith.divf %9, %10 : vector<16x1xf32>
    %12 = vector.broadcast %11 : vector<16x1xf32> to vector<16x32xf32>
    %13 = arith.subf %3, %12 : vector<16x32xf32>
    %14 = arith.mulf %13, %13 : vector<16x32xf32>
    %cst_9 = arith.constant dense<0.000000e+00> : vector<16xf32>
    %15 = vector.multi_reduction <add>, %14, %cst_9 [1] : vector<16x32xf32> to vector<16xf32>
    %16 = vector.shape_cast %15 : vector<16xf32> to vector<16x1xf32>
    %cst_10 = arith.constant 3.200000e+01 : f32
    %17 = vector.broadcast %cst_10 : f32 to vector<16x1xf32>
    %18 = arith.divf %16, %17 : vector<16x1xf32>
    %cst_11 = arith.constant 9.99999974E-6 : f32
    %19 = vector.broadcast %cst_11 : f32 to vector<16x1xf32>
    %20 = arith.addf %18, %19 : vector<16x1xf32>
    %21 = math.rsqrt %20 : vector<16x1xf32>
    %22 = vector.broadcast %21 : vector<16x1xf32> to vector<16x32xf32>
    %23 = arith.mulf %13, %22 : vector<16x32xf32>
    %24 = vector.broadcast %5 : vector<1x32xf32> to vector<16x32xf32>
    %25 = arith.mulf %23, %24 : vector<16x32xf32>
    %26 = vector.broadcast %7 : vector<1x32xf32> to vector<16x32xf32>
    %27 = arith.addf %25, %26 : vector<16x32xf32>
    %c0_12 = arith.constant 0 : index
    %c0_13 = arith.constant 0 : index
    %c0_14 = arith.constant 0 : index
    %28 = vector.load %arg6[%c0_12, %c0_13, %c0_14] : memref<1x32x96xf32, #tpu.memory_space<vmem>>, vector<1x32x96xf32>
    %29 = vector.shape_cast %28 : vector<1x32x96xf32> to vector<32x96xf32>
    %30 = arith.truncf %27 : vector<16x32xf32> to vector<16x32xbf16>
    %31 = arith.truncf %29 : vector<32x96xf32> to vector<32x96xbf16>
    %cst_15 = arith.constant dense<0.000000e+00> : vector<16x96xf32>
    %32 = tpu.matmul %30, %31, %cst_15 {dimension_numbers = #tpu.dot_dimension_numbers<[1], [0], [0], [1], [0, 0, 1, 1], [], []>} : vector<16x32xbf16>, vector<32x96xbf16>, vector<16x96xf32> -> vector<16x96xf32>
    %c0_16 = arith.constant 0 : index
    %c0_17 = arith.constant 0 : index
    %c0_18 = arith.constant 0 : index
    %33 = vector.load %arg7[%c0_16, %c0_17, %c0_18] : memref<1x1x96xf32, #tpu.memory_space<vmem>>, vector<1x1x96xf32>
    %34 = vector.shape_cast %33 : vector<1x1x96xf32> to vector<1x96xf32>
    %35 = vector.broadcast %34 : vector<1x96xf32> to vector<16x96xf32>
    %36 = arith.addf %32, %35 : vector<16x96xf32>
    %37 = tpu.iota {dimensions = array<i32: 0>} : vector<8x8xi32>
    %38 = tpu.iota {dimensions = array<i32: 1>} : vector<8x8xi32>
    %39 = arith.cmpi sle, %38, %37 : vector<8x8xi32>
    %cst_19 = arith.constant 0.000000e+00 : f32
    %cst_20 = arith.constant -1.000000e+09 : f32
    %40 = vector.broadcast %cst_19 : f32 to vector<8x8xf32>
    %41 = vector.broadcast %cst_20 : f32 to vector<8x8xf32>
    %42 = arith.select %39, %40, %41 : vector<8x8xi1>, vector<8x8xf32>
    %43 = vector.shape_cast %42 : vector<8x8xf32> to vector<1x8x8xf32>
    %c0_21 = arith.constant 0 : index
    %c0_22 = arith.constant 0 : index
    %44 = vector.load %arg2[%c0_21, %c0_22] : memref<2x8xf32, #tpu.memory_space<vmem>>, vector<2x8xf32>
    %45 = vector.shape_cast %44 : vector<2x8xf32> to vector<2x1x8xf32>
    %46 = vector.broadcast %43 : vector<1x8x8xf32> to vector<2x8x8xf32>
    %47 = vector.broadcast %45 : vector<2x1x8xf32> to vector<2x8x8xf32>
    %48 = arith.addf %46, %47 : vector<2x8x8xf32>
    %49 = vector.extract_strided_slice %36 {offsets = [0, 0], sizes = [16, 32], strides = [1, 1]} : vector<16x96xf32> to vector<16x32xf32>
    %50 = vector.shape_cast %49 : vector<16x32xf32> to vector<2x8x32xf32>
    %51 = vector.extract_strided_slice %36 {offsets = [0, 32], sizes = [16, 32], strides = [1, 1]} : vector<16x96xf32> to vector<16x32xf32>
    %52 = vector.shape_cast %51 : vector<16x32xf32> to vector<2x8x32xf32>
    %53 = vector.extract_strided_slice %36 {offsets = [0, 64], sizes = [16, 32], strides = [1, 1]} : vector<16x96xf32> to vector<16x32xf32>
    %54 = vector.shape_cast %53 : vector<16x32xf32> to vector<2x8x32xf32>
    %c0_23 = arith.constant 0 : index
    %c0_24 = arith.constant 0 : index
    %c0_25 = arith.constant 0 : index
    %55 = vector.load %arg8[%c0_23, %c0_24, %c0_25] : memref<1x32x32xf32, #tpu.memory_space<vmem>>, vector<1x32x32xf32>
    %56 = vector.shape_cast %55 : vector<1x32x32xf32> to vector<32x32xf32>
    %cst_26 = arith.constant 0.000000e+00 : f32
    %57 = vector.broadcast %cst_26 : f32 to vector<16x32xf32>
    %58 = vector.extract_strided_slice %50 {offsets = [0, 0, 0], sizes = [2, 8, 8], strides = [1, 1, 1]} : vector<2x8x32xf32> to vector<2x8x8xf32>
    %59 = arith.truncf %58 : vector<2x8x8xf32> to vector<2x8x8xbf16>
    %60 = vector.extract_strided_slice %52 {offsets = [0, 0, 0], sizes = [2, 8, 8], strides = [1, 1, 1]} : vector<2x8x32xf32> to vector<2x8x8xf32>
    %61 = arith.truncf %60 : vector<2x8x8xf32> to vector<2x8x8xbf16>
    %62 = vector.extract_strided_slice %54 {offsets = [0, 0, 0], sizes = [2, 8, 8], strides = [1, 1, 1]} : vector<2x8x32xf32> to vector<2x8x8xf32>
    %63 = arith.truncf %62 : vector<2x8x8xf32> to vector<2x8x8xbf16>
    "tpu.trace_start"() <{level = 10 : i32, message = "bqd,bkd->bqk"}> : () -> ()
    %cst_27 = arith.constant dense<0.000000e+00> : vector<2x8x8xf32>
    %64 = tpu.matmul %59, %61, %cst_27 {dimension_numbers = #tpu.dot_dimension_numbers<[2], [2], [1], [1], [0, 0, 0, 1, 1, 1], [0], [0]>} : vector<2x8x8xbf16>, vector<2x8x8xbf16>, vector<2x8x8xf32> -> vector<2x8x8xf32>
    "tpu.trace_stop"() : () -> ()
    %cst_28 = arith.constant 0.353553385 : f32
    %65 = vector.broadcast %cst_28 : f32 to vector<2x8x8xf32>
    %66 = arith.mulf %64, %65 : vector<2x8x8xf32>
    %67 = arith.addf %66, %48 : vector<2x8x8xf32>
    %cst_29 = arith.constant dense<0xFF800000> : vector<2x8xf32>
    %68 = vector.multi_reduction <maximumf>, %67, %cst_29 [2] : vector<2x8x8xf32> to vector<2x8xf32>
    %69 = vector.shape_cast %68 : vector<2x8xf32> to vector<2x8x1xf32>
    %70 = vector.broadcast %69 : vector<2x8x1xf32> to vector<2x8x8xf32>
    %71 = arith.subf %67, %70 : vector<2x8x8xf32>
    %72 = math.exp %71 : vector<2x8x8xf32>
    %cst_30 = arith.constant dense<0.000000e+00> : vector<2x8xf32>
    %73 = vector.multi_reduction <add>, %72, %cst_30 [2] : vector<2x8x8xf32> to vector<2x8xf32>
    %74 = vector.shape_cast %73 : vector<2x8xf32> to vector<2x8x1xf32>
    %75 = tpu.reciprocal %74 {approx = true} : vector<2x8x1xf32> -> vector<2x8x1xf32>
    %76 = vector.broadcast %75 : vector<2x8x1xf32> to vector<2x8x8xf32>
    %77 = arith.mulf %72, %76 : vector<2x8x8xf32>
    %78 = arith.truncf %77 : vector<2x8x8xf32> to vector<2x8x8xbf16>
    "tpu.trace_start"() <{level = 10 : i32, message = "bqk,bkd->bqd"}> : () -> ()
    %cst_31 = arith.constant dense<0.000000e+00> : vector<2x8x8xf32>
    %79 = tpu.matmul %78, %63, %cst_31 {dimension_numbers = #tpu.dot_dimension_numbers<[2], [1], [1], [2], [0, 0, 0, 1, 1, 2], [0], [0]>} : vector<2x8x8xbf16>, vector<2x8x8xbf16>, vector<2x8x8xf32> -> vector<2x8x8xf32>
    "tpu.trace_stop"() : () -> ()
    %80 = vector.shape_cast %79 : vector<2x8x8xf32> to vector<16x8xf32>
    %81 = arith.truncf %80 : vector<16x8xf32> to vector<16x8xbf16>
    %82 = vector.extract_strided_slice %56 {offsets = [0, 0], sizes = [8, 32], strides = [1, 1]} : vector<32x32xf32> to vector<8x32xf32>
    %83 = arith.truncf %82 : vector<8x32xf32> to vector<8x32xbf16>
    %cst_32 = arith.constant dense<0.000000e+00> : vector<16x32xf32>
    %84 = tpu.matmul %81, %83, %cst_32 {dimension_numbers = #tpu.dot_dimension_numbers<[1], [0], [0], [1], [0, 0, 1, 1], [], []>} : vector<16x8xbf16>, vector<8x32xbf16>, vector<16x32xf32> -> vector<16x32xf32>
    %85 = arith.addf %57, %84 : vector<16x32xf32>
    %86 = vector.extract_strided_slice %50 {offsets = [0, 0, 8], sizes = [2, 8, 8], strides = [1, 1, 1]} : vector<2x8x32xf32> to vector<2x8x8xf32>
    %87 = arith.truncf %86 : vector<2x8x8xf32> to vector<2x8x8xbf16>
    %88 = vector.extract_strided_slice %52 {offsets = [0, 0, 8], sizes = [2, 8, 8], strides = [1, 1, 1]} : vector<2x8x32xf32> to vector<2x8x8xf32>
    %89 = arith.truncf %88 : vector<2x8x8xf32> to vector<2x8x8xbf16>
    %90 = vector.extract_strided_slice %54 {offsets = [0, 0, 8], sizes = [2, 8, 8], strides = [1, 1, 1]} : vector<2x8x32xf32> to vector<2x8x8xf32>
    %91 = arith.truncf %90 : vector<2x8x8xf32> to vector<2x8x8xbf16>
    "tpu.trace_start"() <{level = 10 : i32, message = "bqd,bkd->bqk"}> : () -> ()
    %cst_33 = arith.constant dense<0.000000e+00> : vector<2x8x8xf32>
    %92 = tpu.matmul %87, %89, %cst_33 {dimension_numbers = #tpu.dot_dimension_numbers<[2], [2], [1], [1], [0, 0, 0, 1, 1, 1], [0], [0]>} : vector<2x8x8xbf16>, vector<2x8x8xbf16>, vector<2x8x8xf32> -> vector<2x8x8xf32>
    "tpu.trace_stop"() : () -> ()
    %cst_34 = arith.constant 0.353553385 : f32
    %93 = vector.broadcast %cst_34 : f32 to vector<2x8x8xf32>
    %94 = arith.mulf %92, %93 : vector<2x8x8xf32>
    %95 = arith.addf %94, %48 : vector<2x8x8xf32>
    %cst_35 = arith.constant dense<0xFF800000> : vector<2x8xf32>
    %96 = vector.multi_reduction <maximumf>, %95, %cst_35 [2] : vector<2x8x8xf32> to vector<2x8xf32>
    %97 = vector.shape_cast %96 : vector<2x8xf32> to vector<2x8x1xf32>
    %98 = vector.broadcast %97 : vector<2x8x1xf32> to vector<2x8x8xf32>
    %99 = arith.subf %95, %98 : vector<2x8x8xf32>
    %100 = math.exp %99 : vector<2x8x8xf32>
    %cst_36 = arith.constant dense<0.000000e+00> : vector<2x8xf32>
    %101 = vector.multi_reduction <add>, %100, %cst_36 [2] : vector<2x8x8xf32> to vector<2x8xf32>
    %102 = vector.shape_cast %101 : vector<2x8xf32> to vector<2x8x1xf32>
    %103 = tpu.reciprocal %102 {approx = true} : vector<2x8x1xf32> -> vector<2x8x1xf32>
    %104 = vector.broadcast %103 : vector<2x8x1xf32> to vector<2x8x8xf32>
    %105 = arith.mulf %100, %104 : vector<2x8x8xf32>
    %106 = arith.truncf %105 : vector<2x8x8xf32> to vector<2x8x8xbf16>
    "tpu.trace_start"() <{level = 10 : i32, message = "bqk,bkd->bqd"}> : () -> ()
    %cst_37 = arith.constant dense<0.000000e+00> : vector<2x8x8xf32>
    %107 = tpu.matmul %106, %91, %cst_37 {dimension_numbers = #tpu.dot_dimension_numbers<[2], [1], [1], [2], [0, 0, 0, 1, 1, 2], [0], [0]>} : vector<2x8x8xbf16>, vector<2x8x8xbf16>, vector<2x8x8xf32> -> vector<2x8x8xf32>
    "tpu.trace_stop"() : () -> ()
    %108 = vector.shape_cast %107 : vector<2x8x8xf32> to vector<16x8xf32>
    %109 = arith.truncf %108 : vector<16x8xf32> to vector<16x8xbf16>
    %110 = vector.extract_strided_slice %56 {offsets = [8, 0], sizes = [8, 32], strides = [1, 1]} : vector<32x32xf32> to vector<8x32xf32>
    %111 = arith.truncf %110 : vector<8x32xf32> to vector<8x32xbf16>
    %cst_38 = arith.constant dense<0.000000e+00> : vector<16x32xf32>
    %112 = tpu.matmul %109, %111, %cst_38 {dimension_numbers = #tpu.dot_dimension_numbers<[1], [0], [0], [1], [0, 0, 1, 1], [], []>} : vector<16x8xbf16>, vector<8x32xbf16>, vector<16x32xf32> -> vector<16x32xf32>
    %113 = arith.addf %85, %112 : vector<16x32xf32>
    %114 = vector.extract_strided_slice %50 {offsets = [0, 0, 16], sizes = [2, 8, 8], strides = [1, 1, 1]} : vector<2x8x32xf32> to vector<2x8x8xf32>
    %115 = arith.truncf %114 : vector<2x8x8xf32> to vector<2x8x8xbf16>
    %116 = vector.extract_strided_slice %52 {offsets = [0, 0, 16], sizes = [2, 8, 8], strides = [1, 1, 1]} : vector<2x8x32xf32> to vector<2x8x8xf32>
    %117 = arith.truncf %116 : vector<2x8x8xf32> to vector<2x8x8xbf16>
    %118 = vector.extract_strided_slice %54 {offsets = [0, 0, 16], sizes = [2, 8, 8], strides = [1, 1, 1]} : vector<2x8x32xf32> to vector<2x8x8xf32>
    %119 = arith.truncf %118 : vector<2x8x8xf32> to vector<2x8x8xbf16>
    "tpu.trace_start"() <{level = 10 : i32, message = "bqd,bkd->bqk"}> : () -> ()
    %cst_39 = arith.constant dense<0.000000e+00> : vector<2x8x8xf32>
    %120 = tpu.matmul %115, %117, %cst_39 {dimension_numbers = #tpu.dot_dimension_numbers<[2], [2], [1], [1], [0, 0, 0, 1, 1, 1], [0], [0]>} : vector<2x8x8xbf16>, vector<2x8x8xbf16>, vector<2x8x8xf32> -> vector<2x8x8xf32>
    "tpu.trace_stop"() : () -> ()
    %cst_40 = arith.constant 0.353553385 : f32
    %121 = vector.broadcast %cst_40 : f32 to vector<2x8x8xf32>
    %122 = arith.mulf %120, %121 : vector<2x8x8xf32>
    %123 = arith.addf %122, %48 : vector<2x8x8xf32>
    %cst_41 = arith.constant dense<0xFF800000> : vector<2x8xf32>
    %124 = vector.multi_reduction <maximumf>, %123, %cst_41 [2] : vector<2x8x8xf32> to vector<2x8xf32>
    %125 = vector.shape_cast %124 : vector<2x8xf32> to vector<2x8x1xf32>
    %126 = vector.broadcast %125 : vector<2x8x1xf32> to vector<2x8x8xf32>
    %127 = arith.subf %123, %126 : vector<2x8x8xf32>
    %128 = math.exp %127 : vector<2x8x8xf32>
    %cst_42 = arith.constant dense<0.000000e+00> : vector<2x8xf32>
    %129 = vector.multi_reduction <add>, %128, %cst_42 [2] : vector<2x8x8xf32> to vector<2x8xf32>
    %130 = vector.shape_cast %129 : vector<2x8xf32> to vector<2x8x1xf32>
    %131 = tpu.reciprocal %130 {approx = true} : vector<2x8x1xf32> -> vector<2x8x1xf32>
    %132 = vector.broadcast %131 : vector<2x8x1xf32> to vector<2x8x8xf32>
    %133 = arith.mulf %128, %132 : vector<2x8x8xf32>
    %134 = arith.truncf %133 : vector<2x8x8xf32> to vector<2x8x8xbf16>
    "tpu.trace_start"() <{level = 10 : i32, message = "bqk,bkd->bqd"}> : () -> ()
    %cst_43 = arith.constant dense<0.000000e+00> : vector<2x8x8xf32>
    %135 = tpu.matmul %134, %119, %cst_43 {dimension_numbers = #tpu.dot_dimension_numbers<[2], [1], [1], [2], [0, 0, 0, 1, 1, 2], [0], [0]>} : vector<2x8x8xbf16>, vector<2x8x8xbf16>, vector<2x8x8xf32> -> vector<2x8x8xf32>
    "tpu.trace_stop"() : () -> ()
    %136 = vector.shape_cast %135 : vector<2x8x8xf32> to vector<16x8xf32>
    %137 = arith.truncf %136 : vector<16x8xf32> to vector<16x8xbf16>
    %138 = vector.extract_strided_slice %56 {offsets = [16, 0], sizes = [8, 32], strides = [1, 1]} : vector<32x32xf32> to vector<8x32xf32>
    %139 = arith.truncf %138 : vector<8x32xf32> to vector<8x32xbf16>
    %cst_44 = arith.constant dense<0.000000e+00> : vector<16x32xf32>
    %140 = tpu.matmul %137, %139, %cst_44 {dimension_numbers = #tpu.dot_dimension_numbers<[1], [0], [0], [1], [0, 0, 1, 1], [], []>} : vector<16x8xbf16>, vector<8x32xbf16>, vector<16x32xf32> -> vector<16x32xf32>
    %141 = arith.addf %113, %140 : vector<16x32xf32>
    %142 = vector.extract_strided_slice %50 {offsets = [0, 0, 24], sizes = [2, 8, 8], strides = [1, 1, 1]} : vector<2x8x32xf32> to vector<2x8x8xf32>
    %143 = arith.truncf %142 : vector<2x8x8xf32> to vector<2x8x8xbf16>
    %144 = vector.extract_strided_slice %52 {offsets = [0, 0, 24], sizes = [2, 8, 8], strides = [1, 1, 1]} : vector<2x8x32xf32> to vector<2x8x8xf32>
    %145 = arith.truncf %144 : vector<2x8x8xf32> to vector<2x8x8xbf16>
    %146 = vector.extract_strided_slice %54 {offsets = [0, 0, 24], sizes = [2, 8, 8], strides = [1, 1, 1]} : vector<2x8x32xf32> to vector<2x8x8xf32>
    %147 = arith.truncf %146 : vector<2x8x8xf32> to vector<2x8x8xbf16>
    "tpu.trace_start"() <{level = 10 : i32, message = "bqd,bkd->bqk"}> : () -> ()
    %cst_45 = arith.constant dense<0.000000e+00> : vector<2x8x8xf32>
    %148 = tpu.matmul %143, %145, %cst_45 {dimension_numbers = #tpu.dot_dimension_numbers<[2], [2], [1], [1], [0, 0, 0, 1, 1, 1], [0], [0]>} : vector<2x8x8xbf16>, vector<2x8x8xbf16>, vector<2x8x8xf32> -> vector<2x8x8xf32>
    "tpu.trace_stop"() : () -> ()
    %cst_46 = arith.constant 0.353553385 : f32
    %149 = vector.broadcast %cst_46 : f32 to vector<2x8x8xf32>
    %150 = arith.mulf %148, %149 : vector<2x8x8xf32>
    %151 = arith.addf %150, %48 : vector<2x8x8xf32>
    %cst_47 = arith.constant dense<0xFF800000> : vector<2x8xf32>
    %152 = vector.multi_reduction <maximumf>, %151, %cst_47 [2] : vector<2x8x8xf32> to vector<2x8xf32>
    %153 = vector.shape_cast %152 : vector<2x8xf32> to vector<2x8x1xf32>
    %154 = vector.broadcast %153 : vector<2x8x1xf32> to vector<2x8x8xf32>
    %155 = arith.subf %151, %154 : vector<2x8x8xf32>
    %156 = math.exp %155 : vector<2x8x8xf32>
    %cst_48 = arith.constant dense<0.000000e+00> : vector<2x8xf32>
    %157 = vector.multi_reduction <add>, %156, %cst_48 [2] : vector<2x8x8xf32> to vector<2x8xf32>
    %158 = vector.shape_cast %157 : vector<2x8xf32> to vector<2x8x1xf32>
    %159 = tpu.reciprocal %158 {approx = true} : vector<2x8x1xf32> -> vector<2x8x1xf32>
    %160 = vector.broadcast %159 : vector<2x8x1xf32> to vector<2x8x8xf32>
    %161 = arith.mulf %156, %160 : vector<2x8x8xf32>
    %162 = arith.truncf %161 : vector<2x8x8xf32> to vector<2x8x8xbf16>
    "tpu.trace_start"() <{level = 10 : i32, message = "bqk,bkd->bqd"}> : () -> ()
    %cst_49 = arith.constant dense<0.000000e+00> : vector<2x8x8xf32>
    %163 = tpu.matmul %162, %147, %cst_49 {dimension_numbers = #tpu.dot_dimension_numbers<[2], [1], [1], [2], [0, 0, 0, 1, 1, 2], [0], [0]>} : vector<2x8x8xbf16>, vector<2x8x8xbf16>, vector<2x8x8xf32> -> vector<2x8x8xf32>
    "tpu.trace_stop"() : () -> ()
    %164 = vector.shape_cast %163 : vector<2x8x8xf32> to vector<16x8xf32>
    %165 = arith.truncf %164 : vector<16x8xf32> to vector<16x8xbf16>
    %166 = vector.extract_strided_slice %56 {offsets = [24, 0], sizes = [8, 32], strides = [1, 1]} : vector<32x32xf32> to vector<8x32xf32>
    %167 = arith.truncf %166 : vector<8x32xf32> to vector<8x32xbf16>
    %cst_50 = arith.constant dense<0.000000e+00> : vector<16x32xf32>
    %168 = tpu.matmul %165, %167, %cst_50 {dimension_numbers = #tpu.dot_dimension_numbers<[1], [0], [0], [1], [0, 0, 1, 1], [], []>} : vector<16x8xbf16>, vector<8x32xbf16>, vector<16x32xf32> -> vector<16x32xf32>
    %169 = arith.addf %141, %168 : vector<16x32xf32>
    %170 = arith.addf %3, %169 : vector<16x32xf32>
    %c0_51 = arith.constant 0 : index
    %c0_52 = arith.constant 0 : index
    %c0_53 = arith.constant 0 : index
    %171 = vector.load %arg9[%c0_51, %c0_52, %c0_53] : memref<1x1x32xf32, #tpu.memory_space<vmem>>, vector<1x1x32xf32>
    %172 = vector.shape_cast %171 : vector<1x1x32xf32> to vector<1x32xf32>
    %173 = vector.broadcast %172 : vector<1x32xf32> to vector<16x32xf32>
    %174 = arith.addf %170, %173 : vector<16x32xf32>
    %c0_54 = arith.constant 0 : index
    %c0_55 = arith.constant 0 : index
    %c0_56 = arith.constant 0 : index
    %175 = vector.load %arg10[%c0_54, %c0_55, %c0_56] : memref<1x1x32xf32, #tpu.memory_space<vmem>>, vector<1x1x32xf32>
    %176 = vector.shape_cast %175 : vector<1x1x32xf32> to vector<1x32xf32>
    %c0_57 = arith.constant 0 : index
    %c0_58 = arith.constant 0 : index
    %c0_59 = arith.constant 0 : index
    %177 = vector.load %arg11[%c0_57, %c0_58, %c0_59] : memref<1x1x32xf32, #tpu.memory_space<vmem>>, vector<1x1x32xf32>
    %178 = vector.shape_cast %177 : vector<1x1x32xf32> to vector<1x32xf32>
    %cst_60 = arith.constant dense<0.000000e+00> : vector<16xf32>
    %179 = vector.multi_reduction <add>, %174, %cst_60 [1] : vector<16x32xf32> to vector<16xf32>
    %180 = vector.shape_cast %179 : vector<16xf32> to vector<16x1xf32>
    %cst_61 = arith.constant 3.200000e+01 : f32
    %181 = vector.broadcast %cst_61 : f32 to vector<16x1xf32>
    %182 = arith.divf %180, %181 : vector<16x1xf32>
    %183 = vector.broadcast %182 : vector<16x1xf32> to vector<16x32xf32>
    %184 = arith.subf %174, %183 : vector<16x32xf32>
    %185 = arith.mulf %184, %184 : vector<16x32xf32>
    %cst_62 = arith.constant dense<0.000000e+00> : vector<16xf32>
    %186 = vector.multi_reduction <add>, %185, %cst_62 [1] : vector<16x32xf32> to vector<16xf32>
    %187 = vector.shape_cast %186 : vector<16xf32> to vector<16x1xf32>
    %cst_63 = arith.constant 3.200000e+01 : f32
    %188 = vector.broadcast %cst_63 : f32 to vector<16x1xf32>
    %189 = arith.divf %187, %188 : vector<16x1xf32>
    %cst_64 = arith.constant 9.99999974E-6 : f32
    %190 = vector.broadcast %cst_64 : f32 to vector<16x1xf32>
    %191 = arith.addf %189, %190 : vector<16x1xf32>
    %192 = math.rsqrt %191 : vector<16x1xf32>
    %193 = vector.broadcast %192 : vector<16x1xf32> to vector<16x32xf32>
    %194 = arith.mulf %184, %193 : vector<16x32xf32>
    %195 = vector.broadcast %176 : vector<1x32xf32> to vector<16x32xf32>
    %196 = arith.mulf %194, %195 : vector<16x32xf32>
    %197 = vector.broadcast %178 : vector<1x32xf32> to vector<16x32xf32>
    %198 = arith.addf %196, %197 : vector<16x32xf32>
    %c0_65 = arith.constant 0 : index
    %c0_66 = arith.constant 0 : index
    %c0_67 = arith.constant 0 : index
    %199 = vector.load %arg12[%c0_65, %c0_66, %c0_67] : memref<1x32x128xf32, #tpu.memory_space<vmem>>, vector<1x32x128xf32>
    %200 = vector.shape_cast %199 : vector<1x32x128xf32> to vector<32x128xf32>
    %201 = arith.truncf %198 : vector<16x32xf32> to vector<16x32xbf16>
    %202 = arith.truncf %200 : vector<32x128xf32> to vector<32x128xbf16>
    %cst_68 = arith.constant dense<0.000000e+00> : vector<16x128xf32>
    %203 = tpu.matmul %201, %202, %cst_68 {dimension_numbers = #tpu.dot_dimension_numbers<[1], [0], [0], [1], [0, 0, 1, 1], [], []>} : vector<16x32xbf16>, vector<32x128xbf16>, vector<16x128xf32> -> vector<16x128xf32>
    %c0_69 = arith.constant 0 : index
    %c0_70 = arith.constant 0 : index
    %c0_71 = arith.constant 0 : index
    %204 = vector.load %arg13[%c0_69, %c0_70, %c0_71] : memref<1x1x128xf32, #tpu.memory_space<vmem>>, vector<1x1x128xf32>
    %205 = vector.shape_cast %204 : vector<1x1x128xf32> to vector<1x128xf32>
    %206 = vector.broadcast %205 : vector<1x128xf32> to vector<16x128xf32>
    %207 = arith.addf %203, %206 : vector<16x128xf32>
    %cst_72 = arith.constant 1.702000e+00 : f32
    %208 = vector.broadcast %cst_72 : f32 to vector<16x128xf32>
    %209 = arith.mulf %208, %207 : vector<16x128xf32>
    %210 = arith.negf %209 : vector<16x128xf32>
    %211 = math.exp %210 : vector<16x128xf32>
    %cst_73 = arith.constant 1.000000e+00 : f32
    %212 = vector.broadcast %cst_73 : f32 to vector<16x128xf32>
    %213 = arith.addf %212, %211 : vector<16x128xf32>
    %214 = arith.divf %212, %213 : vector<16x128xf32>
    %215 = arith.mulf %207, %214 : vector<16x128xf32>
    %c0_74 = arith.constant 0 : index
    %c0_75 = arith.constant 0 : index
    %c0_76 = arith.constant 0 : index
    %216 = vector.load %arg14[%c0_74, %c0_75, %c0_76] : memref<1x128x32xf32, #tpu.memory_space<vmem>>, vector<1x128x32xf32>
    %217 = vector.shape_cast %216 : vector<1x128x32xf32> to vector<128x32xf32>
    %218 = arith.truncf %215 : vector<16x128xf32> to vector<16x128xbf16>
    %219 = arith.truncf %217 : vector<128x32xf32> to vector<128x32xbf16>
    %cst_77 = arith.constant dense<0.000000e+00> : vector<16x32xf32>
    %220 = tpu.matmul %218, %219, %cst_77 {dimension_numbers = #tpu.dot_dimension_numbers<[1], [0], [0], [1], [0, 0, 1, 1], [], []>} : vector<16x128xbf16>, vector<128x32xbf16>, vector<16x32xf32> -> vector<16x32xf32>
    %c0_78 = arith.constant 0 : index
    %c0_79 = arith.constant 0 : index
    %c0_80 = arith.constant 0 : index
    %221 = vector.load %arg15[%c0_78, %c0_79, %c0_80] : memref<1x1x32xf32, #tpu.memory_space<vmem>>, vector<1x1x32xf32>
    %222 = vector.shape_cast %221 : vector<1x1x32xf32> to vector<1x32xf32>
    %223 = vector.broadcast %222 : vector<1x32xf32> to vector<16x32xf32>
    %224 = arith.addf %220, %223 : vector<16x32xf32>
    %225 = arith.addf %174, %224 : vector<16x32xf32>
    %c0_81 = arith.constant 0 : index
    %c0_82 = arith.constant 0 : index
    %226 = vector.load %arg20[%c0_81, %c0_82] : memref<16x32xf32, #tpu.memory_space<vmem>>, vector<16x32xf32>
    tpu.vector_store %arg20[%c0_81, %c0_82], %225 {strides = array<i32>} : memref<16x32xf32, #tpu.memory_space<vmem>>, vector<16x32xf32>,
    %c1_i32 = arith.constant 1 : i32
    %227 = arith.cmpi eq, %arg0, %c1_i32 : i32
    %228 = arith.extui %227 : i1 to i32
    %c0_i32_83 = arith.constant 0 : i32
    %229 = arith.cmpi ne, %228, %c0_i32_83 : i32
    scf.if %229 {
      %c0_84 = arith.constant 0 : index
      %c0_85 = arith.constant 0 : index
      %230 = vector.load %arg3[%c0_84, %c0_85] : memref<2x16xf32, #tpu.memory_space<vmem>>, vector<2x16xf32>
      %cst_86 = arith.constant dense<0.000000e+00> : vector<2x32xf32>
      %231 = tpu.matmul %230, %225, %cst_86 {dimension_numbers = #tpu.dot_dimension_numbers<[1], [0], [0], [1], [0, 0, 1, 1], [], []>} : vector<2x16xf32>, vector<16x32xf32>, vector<2x32xf32> -> vector<2x32xf32>
      %c0_87 = arith.constant 0 : index
      %c0_88 = arith.constant 0 : index
      %232 = vector.load %arg16[%c0_87, %c0_88] : memref<1x32xf32, #tpu.memory_space<vmem>>, vector<1x32xf32>
      %c0_89 = arith.constant 0 : index
      %c0_90 = arith.constant 0 : index
      %233 = vector.load %arg17[%c0_89, %c0_90] : memref<1x32xf32, #tpu.memory_space<vmem>>, vector<1x32xf32>
      %cst_91 = arith.constant dense<0.000000e+00> : vector<2xf32>
      %234 = vector.multi_reduction <add>, %231, %cst_91 [1] : vector<2x32xf32> to vector<2xf32>
      %235 = vector.shape_cast %234 : vector<2xf32> to vector<2x1xf32>
      %cst_92 = arith.constant 3.200000e+01 : f32
      %236 = vector.broadcast %cst_92 : f32 to vector<2x1xf32>
      %237 = arith.divf %235, %236 : vector<2x1xf32>
      %238 = vector.broadcast %237 : vector<2x1xf32> to vector<2x32xf32>
      %239 = arith.subf %231, %238 : vector<2x32xf32>
      %240 = arith.mulf %239, %239 : vector<2x32xf32>
      %cst_93 = arith.constant dense<0.000000e+00> : vector<2xf32>
      %241 = vector.multi_reduction <add>, %240, %cst_93 [1] : vector<2x32xf32> to vector<2xf32>
      %242 = vector.shape_cast %241 : vector<2xf32> to vector<2x1xf32>
      %cst_94 = arith.constant 3.200000e+01 : f32
      %243 = vector.broadcast %cst_94 : f32 to vector<2x1xf32>
      %244 = arith.divf %242, %243 : vector<2x1xf32>
      %cst_95 = arith.constant 9.99999974E-6 : f32
      %245 = vector.broadcast %cst_95 : f32 to vector<2x1xf32>
      %246 = arith.addf %244, %245 : vector<2x1xf32>
      %247 = math.rsqrt %246 : vector<2x1xf32>
      %248 = vector.broadcast %247 : vector<2x1xf32> to vector<2x32xf32>
      %249 = arith.mulf %239, %248 : vector<2x32xf32>
      %250 = vector.broadcast %232 : vector<1x32xf32> to vector<2x32xf32>
      %251 = arith.mulf %249, %250 : vector<2x32xf32>
      %252 = vector.broadcast %233 : vector<1x32xf32> to vector<2x32xf32>
      %253 = arith.addf %251, %252 : vector<2x32xf32>
      %254 = arith.truncf %253 : vector<2x32xf32> to vector<2x32xbf16>
      %c0_96 = arith.constant 0 : index
      %c0_97 = arith.constant 0 : index
      %255 = vector.load %arg18[%c0_96, %c0_97] : memref<32x16xf32, #tpu.memory_space<vmem>>, vector<32x16xf32>
      %256 = arith.truncf %255 : vector<32x16xf32> to vector<32x16xbf16>
      %cst_98 = arith.constant dense<0.000000e+00> : vector<2x16xf32>
      %257 = tpu.matmul %254, %256, %cst_98 {dimension_numbers = #tpu.dot_dimension_numbers<[1], [0], [0], [1], [0, 0, 1, 1], [], []>} : vector<2x32xbf16>, vector<32x16xbf16>, vector<2x16xf32> -> vector<2x16xf32>
      %c0_99 = arith.constant 0 : index
      %c0_100 = arith.constant 0 : index
      %258 = vector.load %arg19[%c0_99, %c0_100] : memref<2x16xf32, #tpu.memory_space<vmem>>, vector<2x16xf32>
      tpu.vector_store %arg19[%c0_99, %c0_100], %257 {strides = array<i32>} : memref<2x16xf32, #tpu.memory_space<vmem>>, vector<2x16xf32>,
    } else {
    }
    return
  }
  func.func @transform_0(%arg0: i32) -> (i32, i32) {
    %c0_i32 = arith.constant 0 : i32
    %c0_i32_0 = arith.constant 0 : i32
    %c0_i32_1 = arith.constant 0 : i32
    return %c0_i32, %c0_i32_0 : i32, i32
  }
  func.func @transform_1(%arg0: i32) -> (i32, i32) {
    %c0_i32 = arith.constant 0 : i32
    %c0_i32_0 = arith.constant 0 : i32
    %c0_i32_1 = arith.constant 0 : i32
    return %c0_i32, %c0_i32_0 : i32, i32
  }
  func.func @transform_2(%arg0: i32) -> (i32, i32) {
    %c0_i32 = arith.constant 0 : i32
    %c0_i32_0 = arith.constant 0 : i32
    %c0_i32_1 = arith.constant 0 : i32
    return %c0_i32, %c0_i32_0 : i32, i32
  }
  func.func @transform_3(%arg0: i32) -> (i32, i32, i32) {
    %c0_i32 = arith.constant 0 : i32
    %c0_i32_0 = arith.constant 0 : i32
    %c0_i32_1 = arith.constant 0 : i32
    return %arg0, %c0_i32, %c0_i32_0 : i32, i32, i32
  }
  func.func @transform_4(%arg0: i32) -> (i32, i32, i32) {
    %c0_i32 = arith.constant 0 : i32
    %c0_i32_0 = arith.constant 0 : i32
    %c0_i32_1 = arith.constant 0 : i32
    return %arg0, %c0_i32, %c0_i32_0 : i32, i32, i32
  }
  func.func @transform_5(%arg0: i32) -> (i32, i32, i32) {
    %c0_i32 = arith.constant 0 : i32
    %c0_i32_0 = arith.constant 0 : i32
    %c0_i32_1 = arith.constant 0 : i32
    return %arg0, %c0_i32, %c0_i32_0 : i32, i32, i32
  }
  func.func @transform_6(%arg0: i32) -> (i32, i32, i32) {
    %c0_i32 = arith.constant 0 : i32
    %c0_i32_0 = arith.constant 0 : i32
    %c0_i32_1 = arith.constant 0 : i32
    return %arg0, %c0_i32, %c0_i32_0 : i32, i32, i32
  }
  func.func @transform_7(%arg0: i32) -> (i32, i32, i32) {
    %c0_i32 = arith.constant 0 : i32
    %c0_i32_0 = arith.constant 0 : i32
    %c0_i32_1 = arith.constant 0 : i32
    return %arg0, %c0_i32, %c0_i32_0 : i32, i32, i32
  }
  func.func @transform_8(%arg0: i32) -> (i32, i32, i32) {
    %c0_i32 = arith.constant 0 : i32
    %c0_i32_0 = arith.constant 0 : i32
    %c0_i32_1 = arith.constant 0 : i32
    return %arg0, %c0_i32, %c0_i32_0 : i32, i32, i32
  }
  func.func @transform_9(%arg0: i32) -> (i32, i32, i32) {
    %c0_i32 = arith.constant 0 : i32
    %c0_i32_0 = arith.constant 0 : i32
    %c0_i32_1 = arith.constant 0 : i32
    return %arg0, %c0_i32, %c0_i32_0 : i32, i32, i32
  }
  func.func @transform_10(%arg0: i32) -> (i32, i32, i32) {
    %c0_i32 = arith.constant 0 : i32
    %c0_i32_0 = arith.constant 0 : i32
    %c0_i32_1 = arith.constant 0 : i32
    return %arg0, %c0_i32, %c0_i32_0 : i32, i32, i32
  }
  func.func @transform_11(%arg0: i32) -> (i32, i32, i32) {
    %c0_i32 = arith.constant 0 : i32
    %c0_i32_0 = arith.constant 0 : i32
    %c0_i32_1 = arith.constant 0 : i32
    return %arg0, %c0_i32, %c0_i32_0 : i32, i32, i32
  }
  func.func @transform_12(%arg0: i32) -> (i32, i32, i32) {
    %c0_i32 = arith.constant 0 : i32
    %c0_i32_0 = arith.constant 0 : i32
    %c0_i32_1 = arith.constant 0 : i32
    return %arg0, %c0_i32, %c0_i32_0 : i32, i32, i32
  }
  func.func @transform_13(%arg0: i32) -> (i32, i32, i32) {
    %c0_i32 = arith.constant 0 : i32
    %c0_i32_0 = arith.constant 0 : i32
    %c0_i32_1 = arith.constant 0 : i32
    return %arg0, %c0_i32, %c0_i32_0 : i32, i32, i32
  }
  func.func @transform_14(%arg0: i32) -> (i32, i32, i32) {
    %c0_i32 = arith.constant 0 : i32
    %c0_i32_0 = arith.constant 0 : i32
    %c0_i32_1 = arith.constant 0 : i32
    return %arg0, %c0_i32, %c0_i32_0 : i32, i32, i32
  }
  func.func @transform_15(%arg0: i32) -> (i32, i32) {
    %c0_i32 = arith.constant 0 : i32
    %c0_i32_0 = arith.constant 0 : i32
    %c0_i32_1 = arith.constant 0 : i32
    return %c0_i32, %c0_i32_0 : i32, i32
  }
  func.func @transform_16(%arg0: i32) -> (i32, i32) {
    %c0_i32 = arith.constant 0 : i32
    %c0_i32_0 = arith.constant 0 : i32
    %c0_i32_1 = arith.constant 0 : i32
    return %c0_i32, %c0_i32_0 : i32, i32
  }
  func.func @transform_17(%arg0: i32) -> (i32, i32) {
    %c0_i32 = arith.constant 0 : i32
    %c0_i32_0 = arith.constant 0 : i32
    %c0_i32_1 = arith.constant 0 : i32
    return %c0_i32, %c0_i32_0 : i32, i32
  }
  func.func @transform_18(%arg0: i32) -> (i32, i32) {
    %c0_i32 = arith.constant 0 : i32
    %c0_i32_0 = arith.constant 0 : i32
    %c0_i32_1 = arith.constant 0 : i32
    return %c0_i32, %c0_i32_0 : i32, i32
  }
}

</mosaic_0001>

<llo_original>
// kernel: clip_text_features.1
$region0: #{clip_text_features.1}
  #allocation0 [shape = 'u32[]', space=smem, size = 0x4, offset = 0x4, fixed_abs, tag = 'smem constant byte address 0x4 - core index']
  #allocation1 [shape = 'u32[144,128]{1,0:T(1,128)}', space=vmem, size = 0x12000, scoped, tag = 'internal scratch']
  #allocation2 [shape = 'f32[16,32]{1,0:T(8,128)}', space=vmem, size = 0x2000, scoped, tag = 'scratch operand']
  %s0 = inlined_call_operand.vmem [shape: f32[16,32], index: 0, kind: input, shape index: {}]
  %s1 = inlined_call_operand.vmem [shape: f32[2,8], index: 1, kind: input, shape index: {}]
  %s2 = inlined_call_operand.vmem [shape: f32[2,16], index: 2, kind: input, shape index: {}]
  %s3 = inlined_call_operand.vmem [shape: f32[2,1,32], index: 3, kind: input, shape index: {}]
  %s4 = inlined_call_operand.vmem [shape: f32[2,1,32], index: 4, kind: input, shape index: {}]
  %s5 = inlined_call_operand.vmem [shape: f32[2,32,96], index: 5, kind: input, shape index: {}]
  %s6 = inlined_call_operand.vmem [shape: f32[2,1,96], index: 6, kind: input, shape index: {}]
  %s7 = inlined_call_operand.vmem [shape: f32[2,32,32], index: 7, kind: input, shape index: {}]
  %s8 = inlined_call_operand.vmem [shape: f32[2,1,32], index: 8, kind: input, shape index: {}]
  %s9 = inlined_call_operand.vmem [shape: f32[2,1,32], index: 9, kind: input, shape index: {}]
  %s10 = inlined_call_operand.vmem [shape: f32[2,1,32], index: 10, kind: input, shape index: {}]
  %s11 = inlined_call_operand.vmem [shape: f32[2,32,128], index: 11, kind: input, shape index: {}]
  %s12 = inlined_call_operand.vmem [shape: f32[2,1,128], index: 12, kind: input, shape index: {}]
  %s13 = inlined_call_operand.vmem [shape: f32[2,128,32], index: 13, kind: input, shape index: {}]
  %s14 = inlined_call_operand.vmem [shape: f32[2,1,32], index: 14, kind: input, shape index: {}]
  %s15 = inlined_call_operand.vmem [shape: f32[1,32], index: 15, kind: input, shape index: {}]
  %s16 = inlined_call_operand.vmem [shape: f32[1,32], index: 16, kind: input, shape index: {}]
  %s17 = inlined_call_operand.vmem [shape: f32[32,16], index: 17, kind: input, shape index: {}]
  %s18 = inlined_call_operand.hbm [shape: f32[2,16], index: 18, kind: output, shape index: {}]
  %s19 = sld [smem:[#allocation0]]
  $region113: #{clip_text_features.1} parent=0
    _
  %s21 = ssub.s32 1, %s19
  %s22 = scalar_select 0, %s21, %s19
  $region1: #{clip_text_features.1} parent=0
    #allocation3 [shape = 'u8[1024]{0}', space=vmem, size = 0x400, scoped, tag = 'output window, operand 0, single buffered']
    #allocation4 [shape = 's32[2]{0}', space=sflag, size = 0x8, scoped, tag = 'scoped memory for clip_text_features.1']
    %23 = vsyncpa [#allocation4], 0
    loop: start=0, step=1, limit=4
    $region2: #{clip_text_features.1} parent=1 // loop_pre_header
      _
    $region3: #{clip_text_features.1} parent=1 // loop_header
      %s25 = sphi 0, %s29
      %p26 = scmp.ge.s32.totalorder %s25, 4
      %s33 = sphi 0, %s33
      %s35 = sphi 0, %s33
      %s36 = sphi 0, %s35
      %s50 = sphi 0, %s36
      %s54 = sphi 0, %s54
      %s56 = sphi 0, %s54
      %s57 = sphi 0, %s56
      %s71 = sphi 0, %s57
      %s75 = sphi 0, %s75
      %s77 = sphi 0, %s75
      %s78 = sphi 0, %s77
      %s92 = sphi 0, %s78
      %s98 = sphi 0, %s100
      %s101 = sphi 0, %s98
      %s102 = sphi 0, %s101
      %s118 = sphi 0, %s102
      %s124 = sphi 0, %s126
      %s127 = sphi 0, %s124
      %s128 = sphi 0, %s127
      %s144 = sphi 0, %s128
      %s150 = sphi 0, %s152
      %s153 = sphi 0, %s150
      %s154 = sphi 0, %s153
      %s170 = sphi 0, %s154
      %s176 = sphi 0, %s178
      %s179 = sphi 0, %s176
      %s180 = sphi 0, %s179
      %s196 = sphi 0, %s180
      %s202 = sphi 0, %s204
      %s205 = sphi 0, %s202
      %s206 = sphi 0, %s205
      %s222 = sphi 0, %s206
      %s228 = sphi 0, %s230
      %s231 = sphi 0, %s228
      %s232 = sphi 0, %s231
      %s248 = sphi 0, %s232
      %s254 = sphi 0, %s256
      %s257 = sphi 0, %s254
      %s258 = sphi 0, %s257
      %s274 = sphi 0, %s258
      %s280 = sphi 0, %s282
      %s283 = sphi 0, %s280
      %s284 = sphi 0, %s283
      %s300 = sphi 0, %s284
      %s306 = sphi 0, %s308
      %s309 = sphi 0, %s306
      %s310 = sphi 0, %s309
      %s326 = sphi 0, %s310
      %s332 = sphi 0, %s334
      %s335 = sphi 0, %s332
      %s336 = sphi 0, %s335
      %s352 = sphi 0, %s336
      %s358 = sphi 0, %s360
      %s361 = sphi 0, %s358
      %s362 = sphi 0, %s361
      %s378 = sphi 0, %s362
      %s384 = sphi 0, %s386
      %s387 = sphi 0, %s384
      %s388 = sphi 0, %s387
      %s404 = sphi 0, %s388
      %s408 = sphi 0, %s408
      %s410 = sphi 0, %s408
      %s411 = sphi 0, %s410
      %s425 = sphi 0, %s411
      %s429 = sphi 0, %s429
      %s431 = sphi 0, %s429
      %s432 = sphi 0, %s431
      %s446 = sphi 0, %s432
      %s450 = sphi 0, %s450
      %s452 = sphi 0, %s450
      %s453 = sphi 0, %s452
      %s467 = sphi 0, %s453
      %s471 = sphi 0, %s471
      %s473 = sphi 0, %s471
      %s474 = sphi 0, %s473
      %s488 = sphi 0, %s474
    $region4: #{clip_text_features.1} parent=1 // loop_header_branch
      %28 = sbr.rel (%p26) target = $region8
    $region5: #{clip_text_features.1} parent=1 // loop_body
      %s30 = ssub.s32 %s25, 1
      %s31 = ssub.s32 %s25, 2
      %s32 = sadd.s32 %s25, 1
      %s34 = sadd.s32 %s33, 1
      %p37 = scmp.eq.s32.totalorder %s25, 1
      %p38 = scmp.ne.s32.totalorder %s33, %s35
      %p39 = scmp.eq.s32.totalorder %s25, 0
      %p40 = por %p38, %p39
      %p41 = scmp.ne.s32.totalorder %s33, %s35
      %p42 = scmp.eq.s32.totalorder %s30, 1
      %p43 = por %p41, %p42
      %p44 = scmp.ne.s32.totalorder %s35, %s36
      %p45 = scmp.eq.s32.totalorder %s30, 0
      %p46 = por %p44, %p45
      %p47 = scmp.ne.s32.totalorder %s35, %s36
      %p48 = scmp.eq.s32.totalorder %s31, 1
      %p49 = por %p47, %p48
      %p51 = scmp.ne.s32.totalorder %s36, %s50
      %p52 = scmp.eq.s32.totalorder %s31, 0
      %p53 = por %p51, %p52
      %s55 = sadd.s32 %s54, 1
      %p58 = scmp.eq.s32.totalorder %s25, 1
      %p59 = scmp.ne.s32.totalorder %s54, %s56
      %p60 = scmp.eq.s32.totalorder %s25, 0
      %p61 = por %p59, %p60
      %p62 = scmp.ne.s32.totalorder %s54, %s56
      %p63 = scmp.eq.s32.totalorder %s30, 1
      %p64 = por %p62, %p63
      %p65 = scmp.ne.s32.totalorder %s56, %s57
      %p66 = scmp.eq.s32.totalorder %s30, 0
      %p67 = por %p65, %p66
      %p68 = scmp.ne.s32.totalorder %s56, %s57
      %p69 = scmp.eq.s32.totalorder %s31, 1
      %p70 = por %p68, %p69
      %p72 = scmp.ne.s32.totalorder %s57, %s71
      %p73 = scmp.eq.s32.totalorder %s31, 0
      %p74 = por %p72, %p73
      %s76 = sadd.s32 %s75, 1
      %p79 = scmp.eq.s32.totalorder %s25, 1
      %p80 = scmp.ne.s32.totalorder %s75, %s77
      %p81 = scmp.eq.s32.totalorder %s25, 0
      %p82 = por %p80, %p81
      %p83 = scmp.ne.s32.totalorder %s75, %s77
      %p84 = scmp.eq.s32.totalorder %s30, 1
      %p85 = por %p83, %p84
      %p86 = scmp.ne.s32.totalorder %s77, %s78
      %p87 = scmp.eq.s32.totalorder %s30, 0
      %p88 = por %p86, %p87
      %p89 = scmp.ne.s32.totalorder %s77, %s78
      %p90 = scmp.eq.s32.totalorder %s31, 1
      %p91 = por %p89, %p90
      %p93 = scmp.ne.s32.totalorder %s78, %s92
      %p94 = scmp.eq.s32.totalorder %s31, 0
      %p95 = por %p93, %p94
      %s96 = ssub.s32 %s25, %s32
      %p97 = scmp.eq.s32.totalorder %s96, 0
      %s99 = sadd.s32 %s98, 1
      %s100 = scalar_select %p97, %s98, %s99
      %p103 = pneg %p97
      %p104 = scmp.eq.s32.totalorder %s25, 1
      %p105 = por %p103, %p104
      %p106 = scmp.ne.s32.totalorder %s98, %s101
      %p107 = scmp.eq.s32.totalorder %s25, 0
      %p108 = por %p106, %p107
      %p109 = scmp.ne.s32.totalorder %s98, %s101
      %p110 = scmp.eq.s32.totalorder %s30, 1
      %p111 = por %p109, %p110
      %p112 = scmp.ne.s32.totalorder %s101, %s102
      %p113 = scmp.eq.s32.totalorder %s30, 0
      %p114 = por %p112, %p113
      %p115 = scmp.ne.s32.totalorder %s101, %s102
      %p116 = scmp.eq.s32.totalorder %s31, 1
      %p117 = por %p115, %p116
      %p119 = scmp.ne.s32.totalorder %s102, %s118
      %p120 = scmp.eq.s32.totalorder %s31, 0
      %p121 = por %p119, %p120
      %s122 = ssub.s32 %s25, %s32
      %p123 = scmp.eq.s32.totalorder %s122, 0
      %s125 = sadd.s32 %s124, 1
      %s126 = scalar_select %p123, %s124, %s125
      %p129 = pneg %p123
      %p130 = scmp.eq.s32.totalorder %s25, 1
      %p131 = por %p129, %p130
      %p132 = scmp.ne.s32.totalorder %s124, %s127
      %p133 = scmp.eq.s32.totalorder %s25, 0
      %p134 = por %p132, %p133
      %p135 = scmp.ne.s32.totalorder %s124, %s127
      %p136 = scmp.eq.s32.totalorder %s30, 1
      %p137 = por %p135, %p136
      %p138 = scmp.ne.s32.totalorder %s127, %s128
      %p139 = scmp.eq.s32.totalorder %s30, 0
      %p140 = por %p138, %p139
      %p141 = scmp.ne.s32.totalorder %s127, %s128
      %p142 = scmp.eq.s32.totalorder %s31, 1
      %p143 = por %p141, %p142
      %p145 = scmp.ne.s32.totalorder %s128, %s144
      %p146 = scmp.eq.s32.totalorder %s31, 0
      %p147 = por %p145, %p146
      %s148 = ssub.s32 %s25, %s32
      %p149 = scmp.eq.s32.totalorder %s148, 0
      %s151 = sadd.s32 %s150, 1
      %s152 = scalar_select %p149, %s150, %s151
      %p155 = pneg %p149
      %p156 = scmp.eq.s32.totalorder %s25, 1
      %p157 = por %p155, %p156
      %p158 = scmp.ne.s32.totalorder %s150, %s153
      %p159 = scmp.eq.s32.totalorder %s25, 0
      %p160 = por %p158, %p159
      %p161 = scmp.ne.s32.totalorder %s150, %s153
      %p162 = scmp.eq.s32.totalorder %s30, 1
      %p163 = por %p161, %p162
      %p164 = scmp.ne.s32.totalorder %s153, %s154
      %p165 = scmp.eq.s32.totalorder %s30, 0
      %p166 = por %p164, %p165
      %p167 = scmp.ne.s32.totalorder %s153, %s154
      %p168 = scmp.eq.s32.totalorder %s31, 1
      %p169 = por %p167, %p168
      %p171 = scmp.ne.s32.totalorder %s154, %s170
      %p172 = scmp.eq.s32.totalorder %s31, 0
      %p173 = por %p171, %p172
      %s174 = ssub.s32 %s25, %s32
      %p175 = scmp.eq.s32.totalorder %s174, 0
      %s177 = sadd.s32 %s176, 1
      %s178 = scalar_select %p175, %s176, %s177
      %p181 = pneg %p175
      %p182 = scmp.eq.s32.totalorder %s25, 1
      %p183 = por %p181, %p182
      %p184 = scmp.ne.s32.totalorder %s176, %s179
      %p185 = scmp.eq.s32.totalorder %s25, 0
      %p186 = por %p184, %p185
      %p187 = scmp.ne.s32.totalorder %s176, %s179
      %p188 = scmp.eq.s32.totalorder %s30, 1
      %p189 = por %p187, %p188
      %p190 = scmp.ne.s32.totalorder %s179, %s180
      %p191 = scmp.eq.s32.totalorder %s30, 0
      %p192 = por %p190, %p191
      %p193 = scmp.ne.s32.totalorder %s179, %s180
      %p194 = scmp.eq.s32.totalorder %s31, 1
      %p195 = por %p193, %p194
      %p197 = scmp.ne.s32.totalorder %s180, %s196
      %p198 = scmp.eq.s32.totalorder %s31, 0
      %p199 = por %p197, %p198
      %s200 = ssub.s32 %s25, %s32
      %p201 = scmp.eq.s32.totalorder %s200, 0
      %s203 = sadd.s32 %s202, 1
      %s204 = scalar_select %p201, %s202, %s203
      %p207 = pneg %p201
      %p208 = scmp.eq.s32.totalorder %s25, 1
      %p209 = por %p207, %p208
      %p210 = scmp.ne.s32.totalorder %s202, %s205
      %p211 = scmp.eq.s32.totalorder %s25, 0
      %p212 = por %p210, %p211
      %p213 = scmp.ne.s32.totalorder %s202, %s205
      %p214 = scmp.eq.s32.totalorder %s30, 1
      %p215 = por %p213, %p214
      %p216 = scmp.ne.s32.totalorder %s205, %s206
      %p217 = scmp.eq.s32.totalorder %s30, 0
      %p218 = por %p216, %p217
      %p219 = scmp.ne.s32.totalorder %s205, %s206
      %p220 = scmp.eq.s32.totalorder %s31, 1
      %p221 = por %p219, %p220
      %p223 = scmp.ne.s32.totalorder %s206, %s222
      %p224 = scmp.eq.s32.totalorder %s31, 0
      %p225 = por %p223, %p224
      %s226 = ssub.s32 %s25, %s32
      %p227 = scmp.eq.s32.totalorder %s226, 0
      %s229 = sadd.s32 %s228, 1
      %s230 = scalar_select %p227, %s228, %s229
      %p233 = pneg %p227
      %p234 = scmp.eq.s32.totalorder %s25, 1
      %p235 = por %p233, %p234
      %p236 = scmp.ne.s32.totalorder %s228, %s231
      %p237 = scmp.eq.s32.totalorder %s25, 0
      %p238 = por %p236, %p237
      %p239 = scmp.ne.s32.totalorder %s228, %s231
      %p240 = scmp.eq.s32.totalorder %s30, 1
      %p241 = por %p239, %p240
      %p242 = scmp.ne.s32.totalorder %s231, %s232
      %p243 = scmp.eq.s32.totalorder %s30, 0
      %p244 = por %p242, %p243
      %p245 = scmp.ne.s32.totalorder %s231, %s232
      %p246 = scmp.eq.s32.totalorder %s31, 1
      %p247 = por %p245, %p246
      %p249 = scmp.ne.s32.totalorder %s232, %s248
      %p250 = scmp.eq.s32.totalorder %s31, 0
      %p251 = por %p249, %p250
      %s252 = ssub.s32 %s25, %s32
      %p253 = scmp.eq.s32.totalorder %s252, 0
      %s255 = sadd.s32 %s254, 1
      %s256 = scalar_select %p253, %s254, %s255
      %p259 = pneg %p253
      %p260 = scmp.eq.s32.totalorder %s25, 1
      %p261 = por %p259, %p260
      %p262 = scmp.ne.s32.totalorder %s254, %s257
      %p263 = scmp.eq.s32.totalorder %s25, 0
      %p264 = por %p262, %p263
      %p265 = scmp.ne.s32.totalorder %s254, %s257
      %p266 = scmp.eq.s32.totalorder %s30, 1
      %p267 = por %p265, %p266
      %p268 = scmp.ne.s32.totalorder %s257, %s258
      %p269 = scmp.eq.s32.totalorder %s30, 0
      %p270 = por %p268, %p269
      %p271 = scmp.ne.s32.totalorder %s257, %s258
      %p272 = scmp.eq.s32.totalorder %s31, 1
      %p273 = por %p271, %p272
      %p275 = scmp.ne.s32.totalorder %s258, %s274
      %p276 = scmp.eq.s32.totalorder %s31, 0
      %p277 = por %p275, %p276
      %s278 = ssub.s32 %s25, %s32
      %p279 = scmp.eq.s32.totalorder %s278, 0
      %s281 = sadd.s32 %s280, 1
      %s282 = scalar_select %p279, %s280, %s281
      %p285 = pneg %p279
      %p286 = scmp.eq.s32.totalorder %s25, 1
      %p287 = por %p285, %p286
      %p288 = scmp.ne.s32.totalorder %s280, %s283
      %p289 = scmp.eq.s32.totalorder %s25, 0
      %p290 = por %p288, %p289
      %p291 = scmp.ne.s32.totalorder %s280, %s283
      %p292 = scmp.eq.s32.totalorder %s30, 1
      %p293 = por %p291, %p292
      %p294 = scmp.ne.s32.totalorder %s283, %s284
      %p295 = scmp.eq.s32.totalorder %s30, 0
      %p296 = por %p294, %p295
      %p297 = scmp.ne.s32.totalorder %s283, %s284
      %p298 = scmp.eq.s32.totalorder %s31, 1
      %p299 = por %p297, %p298
      %p301 = scmp.ne.s32.totalorder %s284, %s300
      %p302 = scmp.eq.s32.totalorder %s31, 0
      %p303 = por %p301, %p302
      %s304 = ssub.s32 %s25, %s32
      %p305 = scmp.eq.s32.totalorder %s304, 0
      %s307 = sadd.s32 %s306, 1
      %s308 = scalar_select %p305, %s306, %s307
      %p311 = pneg %p305
      %p312 = scmp.eq.s32.totalorder %s25, 1
      %p313 = por %p311, %p312
      %p314 = scmp.ne.s32.totalorder %s306, %s309
      %p315 = scmp.eq.s32.totalorder %s25, 0
      %p316 = por %p314, %p315
      %p317 = scmp.ne.s32.totalorder %s306, %s309
      %p318 = scmp.eq.s32.totalorder %s30, 1
      %p319 = por %p317, %p318
      %p320 = scmp.ne.s32.totalorder %s309, %s310
      %p321 = scmp.eq.s32.totalorder %s30, 0
      %p322 = por %p320, %p321
      %p323 = scmp.ne.s32.totalorder %s309, %s310
      %p324 = scmp.eq.s32.totalorder %s31, 1
      %p325 = por %p323, %p324
      %p327 = scmp.ne.s32.totalorder %s310, %s326
      %p328 = scmp.eq.s32.totalorder %s31, 0
      %p329 = por %p327, %p328
      %s330 = ssub.s32 %s25, %s32
      %p331 = scmp.eq.s32.totalorder %s330, 0
      %s333 = sadd.s32 %s332, 1
      %s334 = scalar_select %p331, %s332, %s333
      %p337 = pneg %p331
      %p338 = scmp.eq.s32.totalorder %s25, 1
      %p339 = por %p337, %p338
      %p340 = scmp.ne.s32.totalorder %s332, %s335
      %p341 = scmp.eq.s32.totalorder %s25, 0
      %p342 = por %p340, %p341
      %p343 = scmp.ne.s32.totalorder %s332, %s335
      %p344 = scmp.eq.s32.totalorder %s30, 1
      %p345 = por %p343, %p344
      %p346 = scmp.ne.s32.totalorder %s335, %s336
      %p347 = scmp.eq.s32.totalorder %s30, 0
      %p348 = por %p346, %p347
      %p349 = scmp.ne.s32.totalorder %s335, %s336
      %p350 = scmp.eq.s32.totalorder %s31, 1
      %p351 = por %p349, %p350
      %p353 = scmp.ne.s32.totalorder %s336, %s352
      %p354 = scmp.eq.s32.totalorder %s31, 0
      %p355 = por %p353, %p354
      %s356 = ssub.s32 %s25, %s32
      %p357 = scmp.eq.s32.totalorder %s356, 0
      %s359 = sadd.s32 %s358, 1
      %s360 = scalar_select %p357, %s358, %s359
      %p363 = pneg %p357
      %p364 = scmp.eq.s32.totalorder %s25, 1
      %p365 = por %p363, %p364
      %p366 = scmp.ne.s32.totalorder %s358, %s361
      %p367 = scmp.eq.s32.totalorder %s25, 0
      %p368 = por %p366, %p367
      %p369 = scmp.ne.s32.totalorder %s358, %s361
      %p370 = scmp.eq.s32.totalorder %s30, 1
      %p371 = por %p369, %p370
      %p372 = scmp.ne.s32.totalorder %s361, %s362
      %p373 = scmp.eq.s32.totalorder %s30, 0
      %p374 = por %p372, %p373
      %p375 = scmp.ne.s32.totalorder %s361, %s362
      %p376 = scmp.eq.s32.totalorder %s31, 1
      %p377 = por %p375, %p376
      %p379 = scmp.ne.s32.totalorder %s362, %s378
      %p380 = scmp.eq.s32.totalorder %s31, 0
      %p381 = por %p379, %p380
      %s382 = ssub.s32 %s25, %s32
      %p383 = scmp.eq.s32.totalorder %s382, 0
      %s385 = sadd.s32 %s384, 1
      %s386 = scalar_select %p383, %s384, %s385
      %p389 = pneg %p383
      %p390 = scmp.eq.s32.totalorder %s25, 1
      %p391 = por %p389, %p390
      %p392 = scmp.ne.s32.totalorder %s384, %s387
      %p393 = scmp.eq.s32.totalorder %s25, 0
      %p394 = por %p392, %p393
      %p395 = scmp.ne.s32.totalorder %s384, %s387
      %p396 = scmp.eq.s32.totalorder %s30, 1
      %p397 = por %p395, %p396
      %p398 = scmp.ne.s32.totalorder %s387, %s388
      %p399 = scmp.eq.s32.totalorder %s30, 0
      %p400 = por %p398, %p399
      %p401 = scmp.ne.s32.totalorder %s387, %s388
      %p402 = scmp.eq.s32.totalorder %s31, 1
      %p403 = por %p401, %p402
      %p405 = scmp.ne.s32.totalorder %s388, %s404
      %p406 = scmp.eq.s32.totalorder %s31, 0
      %p407 = por %p405, %p406
      %s409 = sadd.s32 %s408, 1
      %p412 = scmp.eq.s32.totalorder %s25, 1
      %p413 = scmp.ne.s32.totalorder %s408, %s410
      %p414 = scmp.eq.s32.totalorder %s25, 0
      %p415 = por %p413, %p414
      %p416 = scmp.ne.s32.totalorder %s408, %s410
      %p417 = scmp.eq.s32.totalorder %s30, 1
      %p418 = por %p416, %p417
      %p419 = scmp.ne.s32.totalorder %s410, %s411
      %p420 = scmp.eq.s32.totalorder %s30, 0
      %p421 = por %p419, %p420
      %p422 = scmp.ne.s32.totalorder %s410, %s411
      %p423 = scmp.eq.s32.totalorder %s31, 1
      %p424 = por %p422, %p423
      %p426 = scmp.ne.s32.totalorder %s411, %s425
      %p427 = scmp.eq.s32.totalorder %s31, 0
      %p428 = por %p426, %p427
      %s430 = sadd.s32 %s429, 1
      %p433 = scmp.eq.s32.totalorder %s25, 1
      %p434 = scmp.ne.s32.totalorder %s429, %s431
      %p435 = scmp.eq.s32.totalorder %s25, 0
      %p436 = por %p434, %p435
      %p437 = scmp.ne.s32.totalorder %s429, %s431
      %p438 = scmp.eq.s32.totalorder %s30, 1
      %p439 = por %p437, %p438
      %p440 = scmp.ne.s32.totalorder %s431, %s432
      %p441 = scmp.eq.s32.totalorder %s30, 0
      %p442 = por %p440, %p441
      %p443 = scmp.ne.s32.totalorder %s431, %s432
      %p444 = scmp.eq.s32.totalorder %s31, 1
      %p445 = por %p443, %p444
      %p447 = scmp.ne.s32.totalorder %s432, %s446
      %p448 = scmp.eq.s32.totalorder %s31, 0
      %p449 = por %p447, %p448
      %s451 = sadd.s32 %s450, 1
      %p454 = scmp.eq.s32.totalorder %s25, 1
      %p455 = scmp.ne.s32.totalorder %s450, %s452
      %p456 = scmp.eq.s32.totalorder %s25, 0
      %p457 = por %p455, %p456
      %p458 = scmp.ne.s32.totalorder %s450, %s452
      %p459 = scmp.eq.s32.totalorder %s30, 1
      %p460 = por %p458, %p459
      %p461 = scmp.ne.s32.totalorder %s452, %s453
      %p462 = scmp.eq.s32.totalorder %s30, 0
      %p463 = por %p461, %p462
      %p464 = scmp.ne.s32.totalorder %s452, %s453
      %p465 = scmp.eq.s32.totalorder %s31, 1
      %p466 = por %p464, %p465
      %p468 = scmp.ne.s32.totalorder %s453, %s467
      %p469 = scmp.eq.s32.totalorder %s31, 0
      %p470 = por %p468, %p469
      %s472 = sadd.s32 %s471, 1
      %p475 = scmp.eq.s32.totalorder %s25, 1
      %p476 = scmp.ne.s32.totalorder %s471, %s473
      %p477 = scmp.eq.s32.totalorder %s25, 0
      %p478 = por %p476, %p477
      %p479 = scmp.ne.s32.totalorder %s471, %s473
      %p480 = scmp.eq.s32.totalorder %s30, 1
      %p481 = por %p479, %p480
      %p482 = scmp.ne.s32.totalorder %s473, %s474
      %p483 = scmp.eq.s32.totalorder %s30, 0
      %p484 = por %p482, %p483
      %p485 = scmp.ne.s32.totalorder %s473, %s474
      %p486 = scmp.eq.s32.totalorder %s31, 1
      %p487 = por %p485, %p486
      %p489 = scmp.ne.s32.totalorder %s474, %s488
      %p490 = scmp.eq.s32.totalorder %s31, 0
      %p491 = por %p489, %p490
      %p492 = scmp.le.s32.totalorder 1, %s25
      %p493 = scmp.lt.s32.totalorder %s25, 3
      %p494 = pnand %p492, %p493
      %p495 = pneg %p494
      // Predicated region
      $region9: #{clip_text_features.1} parent=5 // pred_check
        _
      $region10: #{clip_text_features.1} parent=5 // pred_check_branch
        %497 = sbr.rel (%p494) target = $region12
      $region11: #{clip_text_features.1} parent=5 // pred_region
        %s498 = ssub.s32 %s25, 1
        // Predicated region
        $region13: #{clip_text_features.1} parent=11 // pred_check
          %p499 = pneg %p46
        $region14: #{clip_text_features.1} parent=11 // pred_check_branch
          %501 = sbr.rel (%p499) target = $region16
        $region15: #{clip_text_features.1} parent=11 // pred_region
          _
        $region16: #{clip_text_features.1} parent=11 // pred_fallthru
          _
        // Predicated region
        $region17: #{clip_text_features.1} parent=11 // pred_check
          %p502 = pneg %p67
        $region18: #{clip_text_features.1} parent=11 // pred_check_branch
          %504 = sbr.rel (%p502) target = $region20
        $region19: #{clip_text_features.1} parent=11 // pred_region
          _
        $region20: #{clip_text_features.1} parent=11 // pred_fallthru
          _
        // Predicated region
        $region21: #{clip_text_features.1} parent=11 // pred_check
          %p505 = pneg %p88
        $region22: #{clip_text_features.1} parent=11 // pred_check_branch
          %507 = sbr.rel (%p505) target = $region24
        $region23: #{clip_text_features.1} parent=11 // pred_region
          _
        $region24: #{clip_text_features.1} parent=11 // pred_fallthru
          _
        // Predicated region
        $region25: #{clip_text_features.1} parent=11 // pred_check
          %p508 = pneg %p421
        $region26: #{clip_text_features.1} parent=11 // pred_check_branch
          %510 = sbr.rel (%p508) target = $region28
        $region27: #{clip_text_features.1} parent=11 // pred_region
          _
        $region28: #{clip_text_features.1} parent=11 // pred_fallthru
          _
        // Predicated region
        $region29: #{clip_text_features.1} parent=11 // pred_check
          %p511 = pneg %p442
        $region30: #{clip_text_features.1} parent=11 // pred_check_branch
          %513 = sbr.rel (%p511) target = $region32
        $region31: #{clip_text_features.1} parent=11 // pred_region
          _
        $region32: #{clip_text_features.1} parent=11 // pred_fallthru
          _
        // Predicated region
        $region33: #{clip_text_features.1} parent=11 // pred_check
          %p514 = pneg %p463
        $region34: #{clip_text_features.1} parent=11 // pred_check_branch
          %516 = sbr.rel (%p514) target = $region36
        $region35: #{clip_text_features.1} parent=11 // pred_region
          _
        $region36: #{clip_text_features.1} parent=11 // pred_fallthru
          _
      $region12: #{clip_text_features.1} parent=5 // pred_fallthru
        _
      %p517 = scmp.lt.s32.totalorder %s25, 2
      // Predicated region
      $region37: #{clip_text_features.1} parent=5 // pred_check
        %p518 = pneg %p517
      $region38: #{clip_text_features.1} parent=5 // pred_check_branch
        %520 = sbr.rel (%p518) target = $region40
      $region39: #{clip_text_features.1} parent=5 // pred_region
        // Predicated region
        $region41: #{clip_text_features.1} parent=39 // pred_check
          %p521 = pneg %p108
        $region42: #{clip_text_features.1} parent=39 // pred_check_branch
          %523 = sbr.rel (%p521) target = $region44
        $region43: #{clip_text_features.1} parent=39 // pred_region
          %p524 = scmp.lt.s32.totalorder %s25, 1
          %s525 = scalar_select %p524, %s25, 1
          %s526 = scalar_lea.vmem %s3, %s525
        $region44: #{clip_text_features.1} parent=39 // pred_fallthru
          _
        // Predicated region
        $region45: #{clip_text_features.1} parent=39 // pred_check
          %p527 = pneg %p134
        $region46: #{clip_text_features.1} parent=39 // pred_check_branch
          %529 = sbr.rel (%p527) target = $region48
        $region47: #{clip_text_features.1} parent=39 // pred_region
          %p530 = scmp.lt.s32.totalorder %s25, 1
          %s531 = scalar_select %p530, %s25, 1
          %s532 = scalar_lea.vmem %s4, %s531
        $region48: #{clip_text_features.1} parent=39 // pred_fallthru
          _
        // Predicated region
        $region49: #{clip_text_features.1} parent=39 // pred_check
          %p533 = pneg %p160
        $region50: #{clip_text_features.1} parent=39 // pred_check_branch
          %535 = sbr.rel (%p533) target = $region52
        $region51: #{clip_text_features.1} parent=39 // pred_region
          %p536 = scmp.lt.s32.totalorder %s25, 1
          %s537 = scalar_select %p536, %s25, 1
          %s538 = smul.addr %s537, 4
          %s539 = smul.addr %s538, 8
          %s540 = scalar_lea.vmem %s5, %s539
        $region52: #{clip_text_features.1} parent=39 // pred_fallthru
          _
        // Predicated region
        $region53: #{clip_text_features.1} parent=39 // pred_check
          %p541 = pneg %p186
        $region54: #{clip_text_features.1} parent=39 // pred_check_branch
          %543 = sbr.rel (%p541) target = $region56
        $region55: #{clip_text_features.1} parent=39 // pred_region
          %p544 = scmp.lt.s32.totalorder %s25, 1
          %s545 = scalar_select %p544, %s25, 1
          %s546 = scalar_lea.vmem %s6, %s545
        $region56: #{clip_text_features.1} parent=39 // pred_fallthru
          _
        // Predicated region
        $region57: #{clip_text_features.1} parent=39 // pred_check
          %p547 = pneg %p212
        $region58: #{clip_text_features.1} parent=39 // pred_check_branch
          %549 = sbr.rel (%p547) target = $region60
        $region59: #{clip_text_features.1} parent=39 // pred_region
          %p550 = scmp.lt.s32.totalorder %s25, 1
          %s551 = scalar_select %p550, %s25, 1
          %s552 = smul.addr %s551, 4
          %s553 = smul.addr %s552, 8
          %s554 = scalar_lea.vmem %s7, %s553
        $region60: #{clip_text_features.1} parent=39 // pred_fallthru
          _
        // Predicated region
        $region61: #{clip_text_features.1} parent=39 // pred_check
          %p555 = pneg %p238
        $region62: #{clip_text_features.1} parent=39 // pred_check_branch
          %557 = sbr.rel (%p555) target = $region64
        $region63: #{clip_text_features.1} parent=39 // pred_region
          %p558 = scmp.lt.s32.totalorder %s25, 1
          %s559 = scalar_select %p558, %s25, 1
          %s560 = scalar_lea.vmem %s8, %s559
        $region64: #{clip_text_features.1} parent=39 // pred_fallthru
          _
        // Predicated region
        $region65: #{clip_text_features.1} parent=39 // pred_check
          %p561 = pneg %p264
        $region66: #{clip_text_features.1} parent=39 // pred_check_branch
          %563 = sbr.rel (%p561) target = $region68
        $region67: #{clip_text_features.1} parent=39 // pred_region
          %p564 = scmp.lt.s32.totalorder %s25, 1
          %s565 = scalar_select %p564, %s25, 1
          %s566 = scalar_lea.vmem %s9, %s565
        $region68: #{clip_text_features.1} parent=39 // pred_fallthru
          _
        // Predicated region
        $region69: #{clip_text_features.1} parent=39 // pred_check
          %p567 = pneg %p290
        $region70: #{clip_text_features.1} parent=39 // pred_check_branch
          %569 = sbr.rel (%p567) target = $region72
        $region71: #{clip_text_features.1} parent=39 // pred_region
          %p570 = scmp.lt.s32.totalorder %s25, 1
          %s571 = scalar_select %p570, %s25, 1
          %s572 = scalar_lea.vmem %s10, %s571
        $region72: #{clip_text_features.1} parent=39 // pred_fallthru
          _
        // Predicated region
        $region73: #{clip_text_features.1} parent=39 // pred_check
          %p573 = pneg %p316
        $region74: #{clip_text_features.1} parent=39 // pred_check_branch
          %575 = sbr.rel (%p573) target = $region76
        $region75: #{clip_text_features.1} parent=39 // pred_region
          %p576 = scmp.lt.s32.totalorder %s25, 1
          %s577 = scalar_select %p576, %s25, 1
          %s578 = smul.addr %s577, 4
          %s579 = smul.addr %s578, 8
          %s580 = scalar_lea.vmem %s11, %s579
        $region76: #{clip_text_features.1} parent=39 // pred_fallthru
          _
        // Predicated region
        $region77: #{clip_text_features.1} parent=39 // pred_check
          %p581 = pneg %p342
        $region78: #{clip_text_features.1} parent=39 // pred_check_branch
          %583 = sbr.rel (%p581) target = $region80
        $region79: #{clip_text_features.1} parent=39 // pred_region
          %p584 = scmp.lt.s32.totalorder %s25, 1
          %s585 = scalar_select %p584, %s25, 1
          %s586 = scalar_lea.vmem %s12, %s585
        $region80: #{clip_text_features.1} parent=39 // pred_fallthru
          _
        // Predicated region
        $region81: #{clip_text_features.1} parent=39 // pred_check
          %p587 = pneg %p368
        $region82: #{clip_text_features.1} parent=39 // pred_check_branch
          %589 = sbr.rel (%p587) target = $region84
        $region83: #{clip_text_features.1} parent=39 // pred_region
          %p590 = scmp.lt.s32.totalorder %s25, 1
          %s591 = scalar_select %p590, %s25, 1
          %s592 = smul.addr %s591, 16
          %s593 = smul.addr %s592, 8
          %s594 = scalar_lea.vmem %s13, %s593
        $region84: #{clip_text_features.1} parent=39 // pred_fallthru
          _
        // Predicated region
        $region85: #{clip_text_features.1} parent=39 // pred_check
          %p595 = pneg %p394
        $region86: #{clip_text_features.1} parent=39 // pred_check_branch
          %597 = sbr.rel (%p595) target = $region88
        $region87: #{clip_text_features.1} parent=39 // pred_region
          %p598 = scmp.lt.s32.totalorder %s25, 1
          %s599 = scalar_select %p598, %s25, 1
          %s600 = scalar_lea.vmem %s14, %s599
        $region88: #{clip_text_features.1} parent=39 // pred_fallthru
          _
      $region40: #{clip_text_features.1} parent=5 // pred_fallthru
        _
      %p601 = scmp.le.s32.totalorder 1, %s25
      %p602 = scmp.lt.s32.totalorder %s25, 3
      %p603 = pnand %p601, %p602
      %p604 = pneg %p603
      // Predicated region
      $region89: #{clip_text_features.1} parent=5 // pred_check
        _
      $region90: #{clip_text_features.1} parent=5 // pred_check_branch
        %606 = sbr.rel (%p603) target = $region92
      $region91: #{clip_text_features.1} parent=5 // pred_region
        %s607 = ssub.s32 %s25, 1
        %p608 = pneg %p46
        %p609 = pneg %p43
        %p610 = pneg %p67
        %p611 = pneg %p64
        %p612 = pneg %p88
        %p613 = pneg %p85
        %p614 = scmp.lt.s32.totalorder %s30, 1
        %s615 = scalar_select %p614, %s30, 1
        %s616 = scalar_lea.vmem %s3, %s615
        %p617 = pneg %p114
        %p618 = pneg %p111
        %p619 = scmp.lt.s32.totalorder %s30, 1
        %s620 = scalar_select %p619, %s30, 1
        %s621 = scalar_lea.vmem %s4, %s620
        %p622 = pneg %p140
        %p623 = pneg %p137
        %p624 = scmp.lt.s32.totalorder %s30, 1
        %s625 = scalar_select %p624, %s30, 1
        %s626 = smul.addr %s625, 4
        %s627 = smul.addr %s626, 8
        %s628 = scalar_lea.vmem %s5, %s627
        %p629 = pneg %p166
        %p630 = pneg %p163
        %p631 = scmp.lt.s32.totalorder %s30, 1
        %s632 = scalar_select %p631, %s30, 1
        %s633 = scalar_lea.vmem %s6, %s632
        %p634 = pneg %p192
        %p635 = pneg %p189
        %p636 = scmp.lt.s32.totalorder %s30, 1
        %s637 = scalar_select %p636, %s30, 1
        %s638 = smul.addr %s637, 4
        %s639 = smul.addr %s638, 8
        %s640 = scalar_lea.vmem %s7, %s639
        %p641 = pneg %p218
        %p642 = pneg %p215
        %p643 = scmp.lt.s32.totalorder %s30, 1
        %s644 = scalar_select %p643, %s30, 1
        %s645 = scalar_lea.vmem %s8, %s644
        %p646 = pneg %p244
        %p647 = pneg %p241
        %p648 = scmp.lt.s32.totalorder %s30, 1
        %s649 = scalar_select %p648, %s30, 1
        %s650 = scalar_lea.vmem %s9, %s649
        %p651 = pneg %p270
        %p652 = pneg %p267
        %p653 = scmp.lt.s32.totalorder %s30, 1
        %s654 = scalar_select %p653, %s30, 1
        %s655 = scalar_lea.vmem %s10, %s654
        %p656 = pneg %p296
        %p657 = pneg %p293
        %p658 = scmp.lt.s32.totalorder %s30, 1
        %s659 = scalar_select %p658, %s30, 1
        %s660 = smul.addr %s659, 4
        %s661 = smul.addr %s660, 8
        %s662 = scalar_lea.vmem %s11, %s661
        %p663 = pneg %p322
        %p664 = pneg %p319
        %p665 = scmp.lt.s32.totalorder %s30, 1
        %s666 = scalar_select %p665, %s30, 1
        %s667 = scalar_lea.vmem %s12, %s666
        %p668 = pneg %p348
        %p669 = pneg %p345
        %p670 = scmp.lt.s32.totalorder %s30, 1
        %s671 = scalar_select %p670, %s30, 1
        %s672 = smul.addr %s671, 16
        %s673 = smul.addr %s672, 8
        %s674 = scalar_lea.vmem %s13, %s673
        %p675 = pneg %p374
        %p676 = pneg %p371
        %p677 = scmp.lt.s32.totalorder %s30, 1
        %s678 = scalar_select %p677, %s30, 1
        %s679 = scalar_lea.vmem %s14, %s678
        %p680 = pneg %p400
        %p681 = pneg %p397
        %p682 = pneg %p421
        %p683 = pneg %p418
        %p684 = pneg %p442
        %p685 = pneg %p439
        %p686 = pneg %p463
        %p687 = pneg %p460
        %p688 = pneg %p484
        %p689 = pneg %p481
        %p690 = scmp.lt.s32.totalorder %s30, 1
        %s691 = scalar_select %p690, %s30, 1
        %s692 = scalar_lea.vmem %s3, %s691
        %p693 = scmp.lt.s32.totalorder %s30, 1
        %s694 = scalar_select %p693, %s30, 1
        %s695 = scalar_lea.vmem %s4, %s694
        %p696 = scmp.lt.s32.totalorder %s30, 1
        %s697 = scalar_select %p696, %s30, 1
        %s698 = smul.addr %s697, 4
        %s699 = smul.addr %s698, 8
        %s700 = scalar_lea.vmem %s5, %s699
        %p701 = scmp.lt.s32.totalorder %s30, 1
        %s702 = scalar_select %p701, %s30, 1
        %s703 = scalar_lea.vmem %s6, %s702
        %p704 = scmp.lt.s32.totalorder %s30, 1
        %s705 = scalar_select %p704, %s30, 1
        %s706 = smul.addr %s705, 4
        %s707 = smul.addr %s706, 8
        %s708 = scalar_lea.vmem %s7, %s707
        %p709 = scmp.lt.s32.totalorder %s30, 1
        %s710 = scalar_select %p709, %s30, 1
        %s711 = scalar_lea.vmem %s8, %s710
        %p712 = scmp.lt.s32.totalorder %s30, 1
        %s713 = scalar_select %p712, %s30, 1
        %s714 = scalar_lea.vmem %s9, %s713
        %p715 = scmp.lt.s32.totalorder %s30, 1
        %s716 = scalar_select %p715, %s30, 1
        %s717 = scalar_lea.vmem %s10, %s716
        %p718 = scmp.lt.s32.totalorder %s30, 1
        %s719 = scalar_select %p718, %s30, 1
        %s720 = smul.addr %s719, 4
        %s721 = smul.addr %s720, 8
        %s722 = scalar_lea.vmem %s11, %s721
        %p723 = scmp.lt.s32.totalorder %s30, 1
        %s724 = scalar_select %p723, %s30, 1
        %s725 = scalar_lea.vmem %s12, %s724
        %p726 = scmp.lt.s32.totalorder %s30, 1
        %s727 = scalar_select %p726, %s30, 1
        %s728 = smul.addr %s727, 16
        %s729 = smul.addr %s728, 8
        %s730 = scalar_lea.vmem %s13, %s729
        %p731 = scmp.lt.s32.totalorder %s30, 1
        %s732 = scalar_select %p731, %s30, 1
        %s733 = scalar_lea.vmem %s14, %s732
        %p735 = scmp.eq.s32.totalorder %s30, 0
        // Predicated region
        $region93: #{clip_text_features.1} parent=91 // pred_check
          %p736 = pneg %p735
        $region94: #{clip_text_features.1} parent=91 // pred_check_branch
          %738 = sbr.rel (%p736) target = $region96
        $region95: #{clip_text_features.1} parent=91 // pred_region
          %v739 = vld [vmem:[%s0] sm:$0xff]
          %v740 = vld [vmem:[%s0 + $0x8] sm:$0xff]
          %vm741 = vcmask 261120
          %742 = vst.msk [vmem:[#allocation2] sm:$0xff] %vm741, %v739
          %743 = vst.msk [vmem:[#allocation2 + $0x8] sm:$0xff] %vm741, %v740
        $region96: #{clip_text_features.1} parent=91 // pred_fallthru
          _
        %v744 = vld [vmem:[#allocation2] sm:$0xff]
        %v745 = vld [vmem:[#allocation2 + $0x8] sm:$0xff]
        %v746 = vld [vmem:[%s692] sm:$0x1]
        %v747 = vld [vmem:[%s695] sm:$0x1]
        %vm748 = vcmask 261120
        %v749 = vsel %vm748, %v744, 0.0
        %750 = vadd.xlane.f32.xlu0 %v749
        %v751 = vpop.xlane.xlu0 %750
        %v752 = vsel %vm748, %v745, 0.0
        %753 = vadd.xlane.f32.xlu0 %v752
        %v754 = vpop.xlane.xlu0 %753
        %v755 = vrcp.pop 32.0
        %v756 = vmul.f32 %v751, %v755
        %v757 = vmul.f32 %v754, %v755
        %v758 = vsub.f32 %v744, %v756
        %v759 = vsub.f32 %v745, %v757
        %v760 = vmul.f32 %v758, %v758
        %v761 = vmul.f32 %v759, %v759
        %v762 = vsel %vm748, %v760, 0.0
        %763 = vadd.xlane.f32.xlu0 %v762
        %v764 = vpop.xlane.xlu0 %763
        %v765 = vsel %vm748, %v761, 0.0
        %766 = vadd.xlane.f32.xlu0 %v765
        %v767 = vpop.xlane.xlu0 %766
        %v768 = vmul.f32 %v764, %v755
        %v769 = vmul.f32 %v767, %v755
        %v770 = vadd.f32 %v768, 1e-05
        %v771 = vadd.f32 %v769, 1e-05
        %v772 = vrsqrt.pop %v770
        %v773 = vrsqrt.pop %v771
        %v774 = vmul.f32 %v758, %v772
        %v775 = vmul.f32 %v759, %v773
        %v777 = vlaneseq
        %v778 = vshrl.u32 %v777, 7
        %v779 = vsub.s32 0, %v778
        %v780 = vrot.slane %v746, %v779
        %v782 = vmul.f32 %v774, %v780
        %v783 = vmul.f32 %v775, %v780
        %v785 = vlaneseq
        %v786 = vshrl.u32 %v785, 7
        %v787 = vsub.s32 0, %v786
        %v788 = vrot.slane %v747, %v787
        %v790 = vadd.f32 %v782, %v788
        %v791 = vadd.f32 %v783, %v788
        %v792 = vld [vmem:[%s700] sm:$0xff]
        %v793 = vld [vmem:[%s700 + $0x8] sm:$0xff]
        %v794 = vld [vmem:[%s700 + $0x10] sm:$0xff]
        %v795 = vld [vmem:[%s700 + $0x18] sm:$0xff]
        %v796 = vpack.c.bf16 %v791, %v790
        %v797 = vpack.c.bf16 %v793, %v792
        %v798 = vpack.c.bf16 %v795, %v794
        %v799 = vld [vmem:[%s703] sm:$0x1]
        %v801 = vlaneseq
        %v802 = vshrl.u32 %v801, 7
        %v803 = vsub.s32 0, %v802
        %v804 = vrot.slane %v799, %v803
        %v807 = vsel %vm748, %v796, 0
        %809 = vmatprep.subr.bf16.mxu0 0
        %810 = vmatpush1.bf16.msra.mxu0 %v797
        %811 = vmatprep.subr.bf16.mxu0 0
        %812 = vmatpush1.bf16.msra.mxu0 %v798
        %813 = vmatprep.subr.bf16.mxu0 0
        %814 = vmatpush1.bf16.msra.mxu0 0
        %815 = vmatprep.subr.bf16.mxu0 0
        %816 = vmatpush1.bf16.msra.mxu0 0
        %817 = vmatprep.subr.bf16.mxu0 0
        %818 = vmatpush1.bf16.msra.mxu0 0
        %819 = vmatprep.subr.bf16.mxu0 0
        %820 = vmatpush1.bf16.msra.mxu0 0
        %821 = vmatprep.subr.bf16.mxu0 0
        %822 = vmatpush1.bf16.msra.mxu0 0
        %823 = vmatprep.subr.bf16.mxu0 0
        %824 = vmatpush1.bf16.msra.mxu0 0
        %825 = vmatprep.subr.bf16.mxu0 0
        %826 = vmatpush1.bf16.msra.mxu0 0
        %827 = vmatprep.subr.bf16.mxu0 0
        %828 = vmatpush1.bf16.msra.mxu0 0
        %829 = vmatprep.subr.bf16.mxu0 0
        %830 = vmatpush1.bf16.msra.mxu0 0
        %831 = vmatprep.subr.bf16.mxu0 0
        %832 = vmatpush1.bf16.msra.mxu0 0
        %833 = vmatprep.subr.bf16.mxu0 0
        %834 = vmatpush1.bf16.msra.mxu0 0
        %835 = vmatprep.subr.bf16.mxu0 0
        %836 = vmatpush1.bf16.msra.mxu0 0
        %837 = vmatprep.subr.bf16.mxu0 0
        %838 = vmatpush1.bf16.msra.mxu0 0
        %839 = vmatprep.subr.bf16.mxu0 0
        %840 = vmatpush1.bf16.msra.mxu0 0
        %841 = vmatprep.mubr.bf16.mxu0 0
        %842 = vmatmul.mubr.bf16.gmra.mrb[0].mxu0 %v807
        %v843 = vpop.f32.mrb[0].mxu0
        %v844 = vadd.f32 %v804, %v843
        %v845 = vpop.f32.mrb[0].mxu0
        %v846 = vpop.f32.mrb[0].mxu0
        %v847 = vadd.f32 %v804, %v846
        %v848 = vpop.f32.mrb[0].mxu0
        %849 = vdwg.mxu0
        %v850 = vlaneseq
        %v851 = vshrl.u32 %v850, 7
        %v852 = vlaneseq
        %v853 = vand.u32 %v852, 127
        %vm854 = vcmp.le.s32.totalorder %v853, %v851
        %v855 = vsel %vm854, 0.0, -1e+09
        %v856 = vld [vmem:[%s1] sm:$0x3]
        %v859 = vunpack.c.l.s4 1966171168
        %v860 = vunpack.c.0.s8 %v859
        %v861 = vlaneseq
        %v862 = vshrl.u32 %v861, 7
        %v863 = vsub.s32 %v860, %v862
        %v864 = vrot.slane %v856, %v863
        %v865 = vcombine.high %v864, %v864
        %v867 = vunpack.c.l.s4 1966171168
        %v868 = vunpack.c.0.s8 %v867
        %v869 = vlaneseq
        %v870 = vshrl.u32 %v869, 7
        %v871 = vsub.s32 %v868, %v870
        %v872 = vrot.slane %v864, %v871
        %v874 = vunpack.c.l.s4 1966171168
        %v875 = vunpack.c.0.s8 %v874
        %v876 = vlaneseq
        %v877 = vshrl.u32 %v876, 7
        %v878 = vsub.s32 %v875, %v877
        %v879 = vrot.slane %v865, %v878
        %v880 = vlaneseq
        %v881 = vshrl.u32 %v880, 7
        %v882 = vsub.s32 0, %v881
        %v883 = vrot.slane %v872, %v882
        %v884 = vlaneseq
        %v885 = vshrl.u32 %v884, 7
        %v886 = vsub.s32 0, %v885
        %v887 = vrot.slane %v879, %v886
        %v890 = vadd.f32 %v855, %v883
        %v891 = vadd.f32 %v855, %v887
        %v892 = vld [vmem:[%s708] sm:$0xff]
        %v893 = vld [vmem:[%s708 + $0x8] sm:$0xff]
        %v894 = vld [vmem:[%s708 + $0x10] sm:$0xff]
        %v895 = vld [vmem:[%s708 + $0x18] sm:$0xff]
        %v896 = vpack.c.bf16 %v844, %v844
        %v897 = vpack.c.bf16 %v847, %v847
        %899 = vrot.lane.b32.xlu0 %v896, 96
        %v900 = vpop.permute.xlu0 %899
        %vm901 = vcmask 64512
        %v903 = vsel %vm901, %v896, 0
        %v906 = vsel %vm901, %v900, 0
        %908 = vmatprep.subr.bf16.mxu0 0
        %909 = vmatpush1.bf16.xpose.msra.mxu0 %v906
        %910 = vmatprep.subr.bf16.mxu0 0
        %911 = vmatpush1.bf16.xpose.msra.mxu0 0
        %912 = vmatprep.subr.bf16.mxu0 0
        %913 = vmatpush1.bf16.xpose.msra.mxu0 0
        %914 = vmatprep.subr.bf16.mxu0 0
        %915 = vmatpush1.bf16.xpose.msra.mxu0 0
        %916 = vmatprep.subr.bf16.mxu0 0
        %917 = vmatpush1.bf16.xpose.msra.mxu0 0
        %918 = vmatprep.subr.bf16.mxu0 0
        %919 = vmatpush1.bf16.xpose.msra.mxu0 0
        %920 = vmatprep.subr.bf16.mxu0 0
        %921 = vmatpush1.bf16.xpose.msra.mxu0 0
        %922 = vmatprep.subr.bf16.mxu0 0
        %923 = vmatpush1.bf16.xpose.msra.mxu0 0
        %924 = vmatprep.subr.bf16.mxu0 0
        %925 = vmatpush1.bf16.xpose.msra.mxu0 0
        %926 = vmatprep.subr.bf16.mxu0 0
        %927 = vmatpush1.bf16.xpose.msra.mxu0 0
        %928 = vmatprep.subr.bf16.mxu0 0
        %929 = vmatpush1.bf16.xpose.msra.mxu0 0
        %930 = vmatprep.subr.bf16.mxu0 0
        %931 = vmatpush1.bf16.xpose.msra.mxu0 0
        %932 = vmatprep.subr.bf16.mxu0 0
        %933 = vmatpush1.bf16.xpose.msra.mxu0 0
        %934 = vmatprep.subr.bf16.mxu0 0
        %935 = vmatpush1.bf16.xpose.msra.mxu0 0
        %936 = vmatprep.subr.bf16.mxu0 0
        %937 = vmatpush1.bf16.xpose.msra.mxu0 0
        %938 = vmatprep.subr.bf16.mxu0 0
        %939 = vmatpush1.bf16.xpose.msra.mxu0 0
        %940 = vmatprep.mubr.bf16.mxu0 0
        %941 = vmatmul.mubr.bf16.gmra.mrb[0].mxu0 %v903
        %v942 = vpop.f32.mrb[0].mxu0
        %v943 = vadd.f32 0.0, %v942
        %v944 = vpop.f32.mrb[0].mxu0
        %v945 = vpop.f32.mrb[0].mxu0
        %v946 = vpop.f32.mrb[0].mxu0
        %947 = vdwg.mxu0
        %949 = vrot.lane.b32.xlu0 %v897, 96
        %v950 = vpop.permute.xlu0 %949
        %v952 = vsel %vm901, %v897, 0
        %v955 = vsel %vm901, %v950, 0
        %957 = vmatprep.subr.bf16.mxu0 0
        %958 = vmatpush1.bf16.xpose.msra.mxu0 %v955
        %959 = vmatprep.subr.bf16.mxu0 0
        %960 = vmatpush1.bf16.xpose.msra.mxu0 0
        %961 = vmatprep.subr.bf16.mxu0 0
        %962 = vmatpush1.bf16.xpose.msra.mxu0 0
        %963 = vmatprep.subr.bf16.mxu0 0
        %964 = vmatpush1.bf16.xpose.msra.mxu0 0
        %965 = vmatprep.subr.bf16.mxu0 0
        %966 = vmatpush1.bf16.xpose.msra.mxu0 0
        %967 = vmatprep.subr.bf16.mxu0 0
        %968 = vmatpush1.bf16.xpose.msra.mxu0 0
        %969 = vmatprep.subr.bf16.mxu0 0
        %970 = vmatpush1.bf16.xpose.msra.mxu0 0
        %971 = vmatprep.subr.bf16.mxu0 0
        %972 = vmatpush1.bf16.xpose.msra.mxu0 0
        %973 = vmatprep.subr.bf16.mxu0 0
        %974 = vmatpush1.bf16.xpose.msra.mxu0 0
        %975 = vmatprep.subr.bf16.mxu0 0
        %976 = vmatpush1.bf16.xpose.msra.mxu0 0
        %977 = vmatprep.subr.bf16.mxu0 0
        %978 = vmatpush1.bf16.xpose.msra.mxu0 0
        %979 = vmatprep.subr.bf16.mxu0 0
        %980 = vmatpush1.bf16.xpose.msra.mxu0 0
        %981 = vmatprep.subr.bf16.mxu0 0
        %982 = vmatpush1.bf16.xpose.msra.mxu0 0
        %983 = vmatprep.subr.bf16.mxu0 0
        %984 = vmatpush1.bf16.xpose.msra.mxu0 0
        %985 = vmatprep.subr.bf16.mxu0 0
        %986 = vmatpush1.bf16.xpose.msra.mxu0 0
        %987 = vmatprep.subr.bf16.mxu0 0
        %988 = vmatpush1.bf16.xpose.msra.mxu0 0
        %989 = vmatprep.mubr.bf16.mxu0 0
        %990 = vmatmul.mubr.bf16.gmra.mrb[0].mxu0 %v952
        %v991 = vpop.f32.mrb[0].mxu0
        %v992 = vadd.f32 0.0, %v991
        %v993 = vpop.f32.mrb[0].mxu0
        %v994 = vpop.f32.mrb[0].mxu0
        %v995 = vpop.f32.mrb[0].mxu0
        %996 = vdwg.mxu0
        %v997 = vmul.f32 %v943, 0.35355338
        %v998 = vmul.f32 %v992, 0.35355338
        %v999 = vadd.f32 %v997, %v890
        %v1000 = vadd.f32 %v998, %v891
        %v1001 = vsel %vm901, %v999, -inf
        %1002 = vmax.xlane.f32.xlu0 %v1001
        %v1003 = vpop.xlane.xlu0 %1002
        %v1004 = vsel %vm901, %v1000, -inf
        %1005 = vmax.xlane.f32.xlu0 %v1004
        %v1006 = vpop.xlane.xlu0 %1005
        %v1007 = vsub.f32 %v999, %v1003
        %v1008 = vsub.f32 %v1000, %v1006
        %v1009 = vmul.f32 %v1007, 1.442695
        %v1010 = vpow.pop %v1009
        %v1011 = vmul.f32 %v1008, 1.442695
        %v1012 = vpow.pop %v1011
        %v1013 = vsel %vm901, %v1010, 0.0
        %1014 = vadd.xlane.f32.xlu0 %v1013
        %v1015 = vpop.xlane.xlu0 %1014
        %v1016 = vsel %vm901, %v1012, 0.0
        %1017 = vadd.xlane.f32.xlu0 %v1016
        %v1018 = vpop.xlane.xlu0 %1017
        %v1019 = vrcp.pop %v1015
        %v1020 = vrcp.pop %v1018
        %v1021 = vmul.f32 %v1010, %v1019
        %v1022 = vmul.f32 %v1012, %v1020
        %v1023 = vpack.c.bf16 %v1021, %v1021
        %v1024 = vpack.c.bf16 %v1022, %v1022
        %1025 = vrot.lane.b32.xlu0 %v896, 64
        %v1026 = vpop.permute.xlu0 %1025
        %v1028 = vsel %vm901, %v1023, 0
        %vm1030 = vcmask 1043456
        %v1032 = vsel %vm1030, %v1026, 0
        %1034 = vmatprep.subr.bf16.mxu0 0
        %1035 = vmatpush1.bf16.msra.mxu0 %v1032
        %1036 = vmatprep.subr.bf16.mxu0 0
        %1037 = vmatpush1.bf16.msra.mxu0 0
        %1038 = vmatprep.subr.bf16.mxu0 0
        %1039 = vmatpush1.bf16.msra.mxu0 0
        %1040 = vmatprep.subr.bf16.mxu0 0
        %1041 = vmatpush1.bf16.msra.mxu0 0
        %1042 = vmatprep.subr.bf16.mxu0 0
        %1043 = vmatpush1.bf16.msra.mxu0 0
        %1044 = vmatprep.subr.bf16.mxu0 0
        %1045 = vmatpush1.bf16.msra.mxu0 0
        %1046 = vmatprep.subr.bf16.mxu0 0
        %1047 = vmatpush1.bf16.msra.mxu0 0
        %1048 = vmatprep.subr.bf16.mxu0 0
        %1049 = vmatpush1.bf16.msra.mxu0 0
        %1050 = vmatprep.subr.bf16.mxu0 0
        %1051 = vmatpush1.bf16.msra.mxu0 0
        %1052 = vmatprep.subr.bf16.mxu0 0
        %1053 = vmatpush1.bf16.msra.mxu0 0
        %1054 = vmatprep.subr.bf16.mxu0 0
        %1055 = vmatpush1.bf16.msra.mxu0 0
        %1056 = vmatprep.subr.bf16.mxu0 0
        %1057 = vmatpush1.bf16.msra.mxu0 0
        %1058 = vmatprep.subr.bf16.mxu0 0
        %1059 = vmatpush1.bf16.msra.mxu0 0
        %1060 = vmatprep.subr.bf16.mxu0 0
        %1061 = vmatpush1.bf16.msra.mxu0 0
        %1062 = vmatprep.subr.bf16.mxu0 0
        %1063 = vmatpush1.bf16.msra.mxu0 0
        %1064 = vmatprep.subr.bf16.mxu0 0
        %1065 = vmatpush1.bf16.msra.mxu0 0
        %1066 = vmatprep.mubr.bf16.mxu0 0
        %1067 = vmatmul.mubr.bf16.gmra.mrb[0].mxu0 %v1028
        %v1068 = vpop.f32.mrb[0].mxu0
        %v1069 = vadd.f32 0.0, %v1068
        %v1070 = vpop.f32.mrb[0].mxu0
        %v1071 = vpop.f32.mrb[0].mxu0
        %v1072 = vpop.f32.mrb[0].mxu0
        %1073 = vdwg.mxu0
        %1074 = vrot.lane.b32.xlu0 %v897, 64
        %v1075 = vpop.permute.xlu0 %1074
        %v1077 = vsel %vm901, %v1024, 0
        %v1080 = vsel %vm1030, %v1075, 0
        %1082 = vmatprep.subr.bf16.mxu0 0
        %1083 = vmatpush1.bf16.msra.mxu0 %v1080
        %1084 = vmatprep.subr.bf16.mxu0 0
        %1085 = vmatpush1.bf16.msra.mxu0 0
        %1086 = vmatprep.subr.bf16.mxu0 0
        %1087 = vmatpush1.bf16.msra.mxu0 0
        %1088 = vmatprep.subr.bf16.mxu0 0
        %1089 = vmatpush1.bf16.msra.mxu0 0
        %1090 = vmatprep.subr.bf16.mxu0 0
        %1091 = vmatpush1.bf16.msra.mxu0 0
        %1092 = vmatprep.subr.bf16.mxu0 0
        %1093 = vmatpush1.bf16.msra.mxu0 0
        %1094 = vmatprep.subr.bf16.mxu0 0
        %1095 = vmatpush1.bf16.msra.mxu0 0
        %1096 = vmatprep.subr.bf16.mxu0 0
        %1097 = vmatpush1.bf16.msra.mxu0 0
        %1098 = vmatprep.subr.bf16.mxu0 0
        %1099 = vmatpush1.bf16.msra.mxu0 0
        %1100 = vmatprep.subr.bf16.mxu0 0
        %1101 = vmatpush1.bf16.msra.mxu0 0
        %1102 = vmatprep.subr.bf16.mxu0 0
        %1103 = vmatpush1.bf16.msra.mxu0 0
        %1104 = vmatprep.subr.bf16.mxu0 0
        %1105 = vmatpush1.bf16.msra.mxu0 0
        %1106 = vmatprep.subr.bf16.mxu0 0
        %1107 = vmatpush1.bf16.msra.mxu0 0
        %1108 = vmatprep.subr.bf16.mxu0 0
        %1109 = vmatpush1.bf16.msra.mxu0 0
        %1110 = vmatprep.subr.bf16.mxu0 0
        %1111 = vmatpush1.bf16.msra.mxu0 0
        %1112 = vmatprep.subr.bf16.mxu0 0
        %1113 = vmatpush1.bf16.msra.mxu0 0
        %1114 = vmatprep.mubr.bf16.mxu0 0
        %1115 = vmatmul.mubr.bf16.gmra.mrb[0].mxu0 %v1077
        %v1116 = vpop.f32.mrb[0].mxu0
        %v1117 = vadd.f32 0.0, %v1116
        %v1118 = vpop.f32.mrb[0].mxu0
        %v1119 = vpop.f32.mrb[0].mxu0
        %v1120 = vpop.f32.mrb[0].mxu0
        %1121 = vdwg.mxu0
        %v1122 = vpack.c.bf16 %v1117, %v1069
        %v1123 = vpack.c.bf16 %v892, %v892
        %1124 = vrot.lane.b32.xlu0 %v896, 120
        %v1125 = vpop.permute.xlu0 %1124
        %1126 = vrot.lane.b32.xlu0 %v896, 88
        %v1127 = vpop.permute.xlu0 %1126
        %v1129 = vsel %vm901, %v1125, 0
        %v1132 = vsel %vm901, %v1127, 0
        %1134 = vmatprep.subr.bf16.mxu0 0
        %1135 = vmatpush1.bf16.xpose.msra.mxu0 %v1132
        %1136 = vmatprep.subr.bf16.mxu0 0
        %1137 = vmatpush1.bf16.xpose.msra.mxu0 0
        %1138 = vmatprep.subr.bf16.mxu0 0
        %1139 = vmatpush1.bf16.xpose.msra.mxu0 0
        %1140 = vmatprep.subr.bf16.mxu0 0
        %1141 = vmatpush1.bf16.xpose.msra.mxu0 0
        %1142 = vmatprep.subr.bf16.mxu0 0
        %1143 = vmatpush1.bf16.xpose.msra.mxu0 0
        %1144 = vmatprep.subr.bf16.mxu0 0
        %1145 = vmatpush1.bf16.xpose.msra.mxu0 0
        %1146 = vmatprep.subr.bf16.mxu0 0
        %1147 = vmatpush1.bf16.xpose.msra.mxu0 0
        %1148 = vmatprep.subr.bf16.mxu0 0
        %1149 = vmatpush1.bf16.xpose.msra.mxu0 0
        %1150 = vmatprep.subr.bf16.mxu0 0
        %1151 = vmatpush1.bf16.xpose.msra.mxu0 0
        %1152 = vmatprep.subr.bf16.mxu0 0
        %1153 = vmatpush1.bf16.xpose.msra.mxu0 0
        %1154 = vmatprep.subr.bf16.mxu0 0
        %1155 = vmatpush1.bf16.xpose.msra.mxu0 0
        %1156 = vmatprep.subr.bf16.mxu0 0
        %1157 = vmatpush1.bf16.xpose.msra.mxu0 0
        %1158 = vmatprep.subr.bf16.mxu0 0
        %1159 = vmatpush1.bf16.xpose.msra.mxu0 0
        %1160 = vmatprep.subr.bf16.mxu0 0
        %1161 = vmatpush1.bf16.xpose.msra.mxu0 0
        %1162 = vmatprep.subr.bf16.mxu0 0
        %1163 = vmatpush1.bf16.xpose.msra.mxu0 0
        %1164 = vmatprep.subr.bf16.mxu0 0
        %1165 = vmatpush1.bf16.xpose.msra.mxu0 0
        %1166 = vmatprep.mubr.bf16.mxu0 0
        %1167 = vmatmul.mubr.bf16.gmra.mrb[0].mxu0 %v1129
        %v1168 = vpop.f32.mrb[0].mxu0
        %v1169 = vadd.f32 0.0, %v1168
        %v1170 = vpop.f32.mrb[0].mxu0
        %v1171 = vpop.f32.mrb[0].mxu0
        %v1172 = vpop.f32.mrb[0].mxu0
        %1173 = vdwg.mxu0
        %1174 = vrot.lane.b32.xlu0 %v897, 120
        %v1175 = vpop.permute.xlu0 %1174
        %1176 = vrot.lane.b32.xlu0 %v897, 88
        %v1177 = vpop.permute.xlu0 %1176
        %v1179 = vsel %vm901, %v1175, 0
        %v1182 = vsel %vm901, %v1177, 0
        %1184 = vmatprep.subr.bf16.mxu0 0
        %1185 = vmatpush1.bf16.xpose.msra.mxu0 %v1182
        %1186 = vmatprep.subr.bf16.mxu0 0
        %1187 = vmatpush1.bf16.xpose.msra.mxu0 0
        %1188 = vmatprep.subr.bf16.mxu0 0
        %1189 = vmatpush1.bf16.xpose.msra.mxu0 0
        %1190 = vmatprep.subr.bf16.mxu0 0
        %1191 = vmatpush1.bf16.xpose.msra.mxu0 0
        %1192 = vmatprep.subr.bf16.mxu0 0
        %1193 = vmatpush1.bf16.xpose.msra.mxu0 0
        %1194 = vmatprep.subr.bf16.mxu0 0
        %1195 = vmatpush1.bf16.xpose.msra.mxu0 0
        %1196 = vmatprep.subr.bf16.mxu0 0
        %1197 = vmatpush1.bf16.xpose.msra.mxu0 0
        %1198 = vmatprep.subr.bf16.mxu0 0
        %1199 = vmatpush1.bf16.xpose.msra.mxu0 0
        %1200 = vmatprep.subr.bf16.mxu0 0
        %1201 = vmatpush1.bf16.xpose.msra.mxu0 0
        %1202 = vmatprep.subr.bf16.mxu0 0
        %1203 = vmatpush1.bf16.xpose.msra.mxu0 0
        %1204 = vmatprep.subr.bf16.mxu0 0
        %1205 = vmatpush1.bf16.xpose.msra.mxu0 0
        %1206 = vmatprep.subr.bf16.mxu0 0
        %1207 = vmatpush1.bf16.xpose.msra.mxu0 0
        %1208 = vmatprep.subr.bf16.mxu0 0
        %1209 = vmatpush1.bf16.xpose.msra.mxu0 0
        %1210 = vmatprep.subr.bf16.mxu0 0
        %1211 = vmatpush1.bf16.xpose.msra.mxu0 0
        %1212 = vmatprep.subr.bf16.mxu0 0
        %1213 = vmatpush1.bf16.xpose.msra.mxu0 0
        %1214 = vmatprep.subr.bf16.mxu0 0
        %1215 = vmatpush1.bf16.xpose.msra.mxu0 0
        %1216 = vmatprep.mubr.bf16.mxu0 0
        %1217 = vmatmul.mubr.bf16.gmra.mrb[0].mxu0 %v1179
        %v1218 = vpop.f32.mrb[0].mxu0
        %v1219 = vadd.f32 0.0, %v1218
        %v1220 = vpop.f32.mrb[0].mxu0
        %v1221 = vpop.f32.mrb[0].mxu0
        %v1222 = vpop.f32.mrb[0].mxu0
        %1223 = vdwg.mxu0
        %v1224 = vmul.f32 %v1169, 0.35355338
        %v1225 = vmul.f32 %v1219, 0.35355338
        %v1226 = vadd.f32 %v1224, %v890
        %v1227 = vadd.f32 %v1225, %v891
        %v1228 = vsel %vm901, %v1226, -inf
        %1229 = vmax.xlane.f32.xlu0 %v1228
        %v1230 = vpop.xlane.xlu0 %1229
        %v1231 = vsel %vm901, %v1227, -inf
        %1232 = vmax.xlane.f32.xlu0 %v1231
        %v1233 = vpop.xlane.xlu0 %1232
        %v1234 = vsub.f32 %v1226, %v1230
        %v1235 = vsub.f32 %v1227, %v1233
        %v1236 = vmul.f32 %v1234, 1.442695
        %v1237 = vpow.pop %v1236
        %v1238 = vmul.f32 %v1235, 1.442695
        %v1239 = vpow.pop %v1238
        %v1240 = vsel %vm901, %v1237, 0.0
        %1241 = vadd.xlane.f32.xlu0 %v1240
        %v1242 = vpop.xlane.xlu0 %1241
        %v1243 = vsel %vm901, %v1239, 0.0
        %1244 = vadd.xlane.f32.xlu0 %v1243
        %v1245 = vpop.xlane.xlu0 %1244
        %v1246 = vrcp.pop %v1242
        %v1247 = vrcp.pop %v1245
        %v1248 = vmul.f32 %v1237, %v1246
        %v1249 = vmul.f32 %v1239, %v1247
        %v1250 = vpack.c.bf16 %v1248, %v1248
        %v1251 = vpack.c.bf16 %v1249, %v1249
        %1252 = vrot.lane.b32.xlu0 %v896, 56
        %v1253 = vpop.permute.xlu0 %1252
        %v1255 = vsel %vm901, %v1250, 0
        %v1258 = vsel %vm1030, %v1253, 0
        %1260 = vmatprep.subr.bf16.mxu0 0
        %1261 = vmatpush1.bf16.msra.mxu0 %v1258
        %1262 = vmatprep.subr.bf16.mxu0 0
        %1263 = vmatpush1.bf16.msra.mxu0 0
        %1264 = vmatprep.subr.bf16.mxu0 0
        %1265 = vmatpush1.bf16.msra.mxu0 0
        %1266 = vmatprep.subr.bf16.mxu0 0
        %1267 = vmatpush1.bf16.msra.mxu0 0
        %1268 = vmatprep.subr.bf16.mxu0 0
        %1269 = vmatpush1.bf16.msra.mxu0 0
        %1270 = vmatprep.subr.bf16.mxu0 0
        %1271 = vmatpush1.bf16.msra.mxu0 0
        %1272 = vmatprep.subr.bf16.mxu0 0
        %1273 = vmatpush1.bf16.msra.mxu0 0
        %1274 = vmatprep.subr.bf16.mxu0 0
        %1275 = vmatpush1.bf16.msra.mxu0 0
        %1276 = vmatprep.subr.bf16.mxu0 0
        %1277 = vmatpush1.bf16.msra.mxu0 0
        %1278 = vmatprep.subr.bf16.mxu0 0
        %1279 = vmatpush1.bf16.msra.mxu0 0
        %1280 = vmatprep.subr.bf16.mxu0 0
        %1281 = vmatpush1.bf16.msra.mxu0 0
        %1282 = vmatprep.subr.bf16.mxu0 0
        %1283 = vmatpush1.bf16.msra.mxu0 0
        %1284 = vmatprep.subr.bf16.mxu0 0
        %1285 = vmatpush1.bf16.msra.mxu0 0
        %1286 = vmatprep.subr.bf16.mxu0 0
        %1287 = vmatpush1.bf16.msra.mxu0 0
        %1288 = vmatprep.subr.bf16.mxu0 0
        %1289 = vmatpush1.bf16.msra.mxu0 0
        %1290 = vmatprep.subr.bf16.mxu0 0
        %1291 = vmatpush1.bf16.msra.mxu0 0
        %1292 = vmatprep.mubr.bf16.mxu0 0
        %1293 = vmatmul.mubr.bf16.gmra.mrb[0].mxu0 %v1255
        %v1294 = vpop.f32.mrb[0].mxu0
        %v1295 = vadd.f32 0.0, %v1294
        %v1296 = vpop.f32.mrb[0].mxu0
        %v1297 = vpop.f32.mrb[0].mxu0
        %v1298 = vpop.f32.mrb[0].mxu0
        %1299 = vdwg.mxu0
        %1300 = vrot.lane.b32.xlu0 %v897, 56
        %v1301 = vpop.permute.xlu0 %1300
        %v1303 = vsel %vm901, %v1251, 0
        %v1306 = vsel %vm1030, %v1301, 0
        %1308 = vmatprep.subr.bf16.mxu0 0
        %1309 = vmatpush1.bf16.msra.mxu0 %v1306
        %1310 = vmatprep.subr.bf16.mxu0 0
        %1311 = vmatpush1.bf16.msra.mxu0 0
        %1312 = vmatprep.subr.bf16.mxu0 0
        %1313 = vmatpush1.bf16.msra.mxu0 0
        %1314 = vmatprep.subr.bf16.mxu0 0
        %1315 = vmatpush1.bf16.msra.mxu0 0
        %1316 = vmatprep.subr.bf16.mxu0 0
        %1317 = vmatpush1.bf16.msra.mxu0 0
        %1318 = vmatprep.subr.bf16.mxu0 0
        %1319 = vmatpush1.bf16.msra.mxu0 0
        %1320 = vmatprep.subr.bf16.mxu0 0
        %1321 = vmatpush1.bf16.msra.mxu0 0
        %1322 = vmatprep.subr.bf16.mxu0 0
        %1323 = vmatpush1.bf16.msra.mxu0 0
        %1324 = vmatprep.subr.bf16.mxu0 0
        %1325 = vmatpush1.bf16.msra.mxu0 0
        %1326 = vmatprep.subr.bf16.mxu0 0
        %1327 = vmatpush1.bf16.msra.mxu0 0
        %1328 = vmatprep.subr.bf16.mxu0 0
        %1329 = vmatpush1.bf16.msra.mxu0 0
        %1330 = vmatprep.subr.bf16.mxu0 0
        %1331 = vmatpush1.bf16.msra.mxu0 0
        %1332 = vmatprep.subr.bf16.mxu0 0
        %1333 = vmatpush1.bf16.msra.mxu0 0
        %1334 = vmatprep.subr.bf16.mxu0 0
        %1335 = vmatpush1.bf16.msra.mxu0 0
        %1336 = vmatprep.subr.bf16.mxu0 0
        %1337 = vmatpush1.bf16.msra.mxu0 0
        %1338 = vmatprep.subr.bf16.mxu0 0
        %1339 = vmatpush1.bf16.msra.mxu0 0
        %1340 = vmatprep.mubr.bf16.mxu0 0
        %1341 = vmatmul.mubr.bf16.gmra.mrb[0].mxu0 %v1303
        %v1342 = vpop.f32.mrb[0].mxu0
        %v1343 = vadd.f32 0.0, %v1342
        %v1344 = vpop.f32.mrb[0].mxu0
        %v1345 = vpop.f32.mrb[0].mxu0
        %v1346 = vpop.f32.mrb[0].mxu0
        %1347 = vdwg.mxu0
        %v1348 = vpack.c.bf16 %v1343, %v1295
        %v1349 = vpack.c.bf16 %v893, %v893
        %v1351 = vsel %vm901, %v1348, 0
        %v1354 = vsel %vm1030, %v1349, 0
        %1356 = vmatprep.subr.bf16.mxu0 0
        %1357 = vmatpush1.bf16.msra.mxu0 %v1354
        %1358 = vmatprep.subr.bf16.mxu0 0
        %1359 = vmatpush1.bf16.msra.mxu0 0
        %1360 = vmatprep.subr.bf16.mxu0 0
        %1361 = vmatpush1.bf16.msra.mxu0 0
        %1362 = vmatprep.subr.bf16.mxu0 0
        %1363 = vmatpush1.bf16.msra.mxu0 0
        %1364 = vmatprep.subr.bf16.mxu0 0
        %1365 = vmatpush1.bf16.msra.mxu0 0
        %1366 = vmatprep.subr.bf16.mxu0 0
        %1367 = vmatpush1.bf16.msra.mxu0 0
        %1368 = vmatprep.subr.bf16.mxu0 0
        %1369 = vmatpush1.bf16.msra.mxu0 0
        %1370 = vmatprep.subr.bf16.mxu0 0
        %1371 = vmatpush1.bf16.msra.mxu0 0
        %1372 = vmatprep.subr.bf16.mxu0 0
        %1373 = vmatpush1.bf16.msra.mxu0 0
        %1374 = vmatprep.subr.bf16.mxu0 0
        %1375 = vmatpush1.bf16.msra.mxu0 0
        %1376 = vmatprep.subr.bf16.mxu0 0
        %1377 = vmatpush1.bf16.msra.mxu0 0
        %1378 = vmatprep.subr.bf16.mxu0 0
        %1379 = vmatpush1.bf16.msra.mxu0 0
        %1380 = vmatprep.subr.bf16.mxu0 0
        %1381 = vmatpush1.bf16.msra.mxu0 0
        %1382 = vmatprep.subr.bf16.mxu0 0
        %1383 = vmatpush1.bf16.msra.mxu0 0
        %1384 = vmatprep.subr.bf16.mxu0 0
        %1385 = vmatpush1.bf16.msra.mxu0 0
        %1386 = vmatprep.subr.bf16.mxu0 0
        %1387 = vmatpush1.bf16.msra.mxu0 0
        %1388 = vmatprep.mubr.bf16.mxu0 0
        %1389 = vmatmul.mubr.bf16.gmra.mrb[0].mxu0 %v1351
        %v1390 = vpop.f32.mrb[0].mxu0
        %v1391 = vadd.f32 0.0, %v1390
        %v1392 = vpop.f32.mrb[0].mxu0
        %v1393 = vpop.f32.mrb[0].mxu0
        %v1394 = vadd.f32 0.0, %v1393
        %v1395 = vpop.f32.mrb[0].mxu0
        %1396 = vdwg.mxu0
        %v1398 = vsel %vm901, %v1122, 0
        %v1401 = vsel %vm1030, %v1123, 0
        %1403 = vmatprep.subr.bf16.mxu0 0
        %1404 = vmatpush1.bf16.msra.mxu0 %v1401
        %1405 = vmatprep.subr.bf16.mxu0 0
        %1406 = vmatpush1.bf16.msra.mxu0 0
        %1407 = vmatprep.subr.bf16.mxu0 0
        %1408 = vmatpush1.bf16.msra.mxu0 0
        %1409 = vmatprep.subr.bf16.mxu0 0
        %1410 = vmatpush1.bf16.msra.mxu0 0
        %1411 = vmatprep.subr.bf16.mxu0 0
        %1412 = vmatpush1.bf16.msra.mxu0 0
        %1413 = vmatprep.subr.bf16.mxu0 0
        %1414 = vmatpush1.bf16.msra.mxu0 0
        %1415 = vmatprep.subr.bf16.mxu0 0
        %1416 = vmatpush1.bf16.msra.mxu0 0
        %1417 = vmatprep.subr.bf16.mxu0 0
        %1418 = vmatpush1.bf16.msra.mxu0 0
        %1419 = vmatprep.subr.bf16.mxu0 0
        %1420 = vmatpush1.bf16.msra.mxu0 0
        %1421 = vmatprep.subr.bf16.mxu0 0
        %1422 = vmatpush1.bf16.msra.mxu0 0
        %1423 = vmatprep.subr.bf16.mxu0 0
        %1424 = vmatpush1.bf16.msra.mxu0 0
        %1425 = vmatprep.subr.bf16.mxu0 0
        %1426 = vmatpush1.bf16.msra.mxu0 0
        %1427 = vmatprep.subr.bf16.mxu0 0
        %1428 = vmatpush1.bf16.msra.mxu0 0
        %1429 = vmatprep.subr.bf16.mxu0 0
        %1430 = vmatpush1.bf16.msra.mxu0 0
        %1431 = vmatprep.subr.bf16.mxu0 0
        %1432 = vmatpush1.bf16.msra.mxu0 0
        %1433 = vmatprep.subr.bf16.mxu0 0
        %1434 = vmatpush1.bf16.msra.mxu0 0
        %1435 = vmatprep.mubr.bf16.mxu0 0
        %1436 = vmatmul.mubr.bf16.gmra.mrb[0].mxu0 %v1398
        %v1437 = vpop.f32.mrb[0].mxu0
        %v1438 = vadd.f32 %v1391, %v1437
        %v1439 = vpop.f32.mrb[0].mxu0
        %v1440 = vpop.f32.mrb[0].mxu0
        %v1441 = vadd.f32 %v1394, %v1440
        %v1442 = vpop.f32.mrb[0].mxu0
        %1443 = vdwg.mxu0
        %1444 = vrot.lane.b32.xlu0 %v896, 112
        %v1445 = vpop.permute.xlu0 %1444
        %1446 = vrot.lane.b32.xlu0 %v896, 80
        %v1447 = vpop.permute.xlu0 %1446
        %v1449 = vsel %vm901, %v1445, 0
        %v1452 = vsel %vm901, %v1447, 0
        %1454 = vmatprep.subr.bf16.mxu0 0
        %1455 = vmatpush1.bf16.xpose.msra.mxu0 %v1452
        %1456 = vmatprep.subr.bf16.mxu0 0
        %1457 = vmatpush1.bf16.xpose.msra.mxu0 0
        %1458 = vmatprep.subr.bf16.mxu0 0
        %1459 = vmatpush1.bf16.xpose.msra.mxu0 0
        %1460 = vmatprep.subr.bf16.mxu0 0
        %1461 = vmatpush1.bf16.xpose.msra.mxu0 0
        %1462 = vmatprep.subr.bf16.mxu0 0
        %1463 = vmatpush1.bf16.xpose.msra.mxu0 0
        %1464 = vmatprep.subr.bf16.mxu0 0
        %1465 = vmatpush1.bf16.xpose.msra.mxu0 0
        %1466 = vmatprep.subr.bf16.mxu0 0
        %1467 = vmatpush1.bf16.xpose.msra.mxu0 0
        %1468 = vmatprep.subr.bf16.mxu0 0
        %1469 = vmatpush1.bf16.xpose.msra.mxu0 0
        %1470 = vmatprep.subr.bf16.mxu0 0
        %1471 = vmatpush1.bf16.xpose.msra.mxu0 0
        %1472 = vmatprep.subr.bf16.mxu0 0
        %1473 = vmatpush1.bf16.xpose.msra.mxu0 0
        %1474 = vmatprep.subr.bf16.mxu0 0
        %1475 = vmatpush1.bf16.xpose.msra.mxu0 0
        %1476 = vmatprep.subr.bf16.mxu0 0
        %1477 = vmatpush1.bf16.xpose.msra.mxu0 0
        %1478 = vmatprep.subr.bf16.mxu0 0
        %1479 = vmatpush1.bf16.xpose.msra.mxu0 0
        %1480 = vmatprep.subr.bf16.mxu0 0
        %1481 = vmatpush1.bf16.xpose.msra.mxu0 0
        %1482 = vmatprep.subr.bf16.mxu0 0
        %1483 = vmatpush1.bf16.xpose.msra.mxu0 0
        %1484 = vmatprep.subr.bf16.mxu0 0
        %1485 = vmatpush1.bf16.xpose.msra.mxu0 0
        %1486 = vmatprep.mubr.bf16.mxu0 0
        %1487 = vmatmul.mubr.bf16.gmra.mrb[0].mxu0 %v1449
        %v1488 = vpop.f32.mrb[0].mxu0
        %v1489 = vadd.f32 0.0, %v1488
        %v1490 = vpop.f32.mrb[0].mxu0
        %v1491 = vpop.f32.mrb[0].mxu0
        %v1492 = vpop.f32.mrb[0].mxu0
        %1493 = vdwg.mxu0
        %1494 = vrot.lane.b32.xlu0 %v897, 112
        %v1495 = vpop.permute.xlu0 %1494
        %1496 = vrot.lane.b32.xlu0 %v897, 80
        %v1497 = vpop.permute.xlu0 %1496
        %v1499 = vsel %vm901, %v1495, 0
        %v1502 = vsel %vm901, %v1497, 0
        %1504 = vmatprep.subr.bf16.mxu0 0
        %1505 = vmatpush1.bf16.xpose.msra.mxu0 %v1502
        %1506 = vmatprep.subr.bf16.mxu0 0
        %1507 = vmatpush1.bf16.xpose.msra.mxu0 0
        %1508 = vmatprep.subr.bf16.mxu0 0
        %1509 = vmatpush1.bf16.xpose.msra.mxu0 0
        %1510 = vmatprep.subr.bf16.mxu0 0
        %1511 = vmatpush1.bf16.xpose.msra.mxu0 0
        %1512 = vmatprep.subr.bf16.mxu0 0
        %1513 = vmatpush1.bf16.xpose.msra.mxu0 0
        %1514 = vmatprep.subr.bf16.mxu0 0
        %1515 = vmatpush1.bf16.xpose.msra.mxu0 0
        %1516 = vmatprep.subr.bf16.mxu0 0
        %1517 = vmatpush1.bf16.xpose.msra.mxu0 0
        %1518 = vmatprep.subr.bf16.mxu0 0
        %1519 = vmatpush1.bf16.xpose.msra.mxu0 0
        %1520 = vmatprep.subr.bf16.mxu0 0
        %1521 = vmatpush1.bf16.xpose.msra.mxu0 0
        %1522 = vmatprep.subr.bf16.mxu0 0
        %1523 = vmatpush1.bf16.xpose.msra.mxu0 0
        %1524 = vmatprep.subr.bf16.mxu0 0
        %1525 = vmatpush1.bf16.xpose.msra.mxu0 0
        %1526 = vmatprep.subr.bf16.mxu0 0
        %1527 = vmatpush1.bf16.xpose.msra.mxu0 0
        %1528 = vmatprep.subr.bf16.mxu0 0
        %1529 = vmatpush1.bf16.xpose.msra.mxu0 0
        %1530 = vmatprep.subr.bf16.mxu0 0
        %1531 = vmatpush1.bf16.xpose.msra.mxu0 0
        %1532 = vmatprep.subr.bf16.mxu0 0
        %1533 = vmatpush1.bf16.xpose.msra.mxu0 0
        %1534 = vmatprep.subr.bf16.mxu0 0
        %1535 = vmatpush1.bf16.xpose.msra.mxu0 0
        %1536 = vmatprep.mubr.bf16.mxu0 0
        %1537 = vmatmul.mubr.bf16.gmra.mrb[0].mxu0 %v1499
        %v1538 = vpop.f32.mrb[0].mxu0
        %v1539 = vadd.f32 0.0, %v1538
        %v1540 = vpop.f32.mrb[0].mxu0
        %v1541 = vpop.f32.mrb[0].mxu0
        %v1542 = vpop.f32.mrb[0].mxu0
        %1543 = vdwg.mxu0
        %v1544 = vmul.f32 %v1489, 0.35355338
        %v1545 = vmul.f32 %v1539, 0.35355338
        %v1546 = vadd.f32 %v1544, %v890
        %v1547 = vadd.f32 %v1545, %v891
        %v1548 = vsel %vm901, %v1546, -inf
        %1549 = vmax.xlane.f32.xlu0 %v1548
        %v1550 = vpop.xlane.xlu0 %1549
        %v1551 = vsel %vm901, %v1547, -inf
        %1552 = vmax.xlane.f32.xlu0 %v1551
        %v1553 = vpop.xlane.xlu0 %1552
        %v1554 = vsub.f32 %v1546, %v1550
        %v1555 = vsub.f32 %v1547, %v1553
        %v1556 = vmul.f32 %v1554, 1.442695
        %v1557 = vpow.pop %v1556
        %v1558 = vmul.f32 %v1555, 1.442695
        %v1559 = vpow.pop %v1558
        %v1560 = vsel %vm901, %v1557, 0.0
        %1561 = vadd.xlane.f32.xlu0 %v1560
        %v1562 = vpop.xlane.xlu0 %1561
        %v1563 = vsel %vm901, %v1559, 0.0
        %1564 = vadd.xlane.f32.xlu0 %v1563
        %v1565 = vpop.xlane.xlu0 %1564
        %v1566 = vrcp.pop %v1562
        %v1567 = vrcp.pop %v1565
        %v1568 = vmul.f32 %v1557, %v1566
        %v1569 = vmul.f32 %v1559, %v1567
        %v1570 = vpack.c.bf16 %v1568, %v1568
        %v1571 = vpack.c.bf16 %v1569, %v1569
        %1572 = vrot.lane.b32.xlu0 %v896, 48
        %v1573 = vpop.permute.xlu0 %1572
        %v1575 = vsel %vm901, %v1570, 0
        %v1578 = vsel %vm1030, %v1573, 0
        %1580 = vmatprep.subr.bf16.mxu0 0
        %1581 = vmatpush1.bf16.msra.mxu0 %v1578
        %1582 = vmatprep.subr.bf16.mxu0 0
        %1583 = vmatpush1.bf16.msra.mxu0 0
        %1584 = vmatprep.subr.bf16.mxu0 0
        %1585 = vmatpush1.bf16.msra.mxu0 0
        %1586 = vmatprep.subr.bf16.mxu0 0
        %1587 = vmatpush1.bf16.msra.mxu0 0
        %1588 = vmatprep.subr.bf16.mxu0 0
        %1589 = vmatpush1.bf16.msra.mxu0 0
        %1590 = vmatprep.subr.bf16.mxu0 0
        %1591 = vmatpush1.bf16.msra.mxu0 0
        %1592 = vmatprep.subr.bf16.mxu0 0
        %1593 = vmatpush1.bf16.msra.mxu0 0
        %1594 = vmatprep.subr.bf16.mxu0 0
        %1595 = vmatpush1.bf16.msra.mxu0 0
        %1596 = vmatprep.subr.bf16.mxu0 0
        %1597 = vmatpush1.bf16.msra.mxu0 0
        %1598 = vmatprep.subr.bf16.mxu0 0
        %1599 = vmatpush1.bf16.msra.mxu0 0
        %1600 = vmatprep.subr.bf16.mxu0 0
        %1601 = vmatpush1.bf16.msra.mxu0 0
        %1602 = vmatprep.subr.bf16.mxu0 0
        %1603 = vmatpush1.bf16.msra.mxu0 0
        %1604 = vmatprep.subr.bf16.mxu0 0
        %1605 = vmatpush1.bf16.msra.mxu0 0
        %1606 = vmatprep.subr.bf16.mxu0 0
        %1607 = vmatpush1.bf16.msra.mxu0 0
        %1608 = vmatprep.subr.bf16.mxu0 0
        %1609 = vmatpush1.bf16.msra.mxu0 0
        %1610 = vmatprep.subr.bf16.mxu0 0
        %1611 = vmatpush1.bf16.msra.mxu0 0
        %1612 = vmatprep.mubr.bf16.mxu0 0
        %1613 = vmatmul.mubr.bf16.gmra.mrb[0].mxu0 %v1575
        %v1614 = vpop.f32.mrb[0].mxu0
        %v1615 = vadd.f32 0.0, %v1614
        %v1616 = vpop.f32.mrb[0].mxu0
        %v1617 = vpop.f32.mrb[0].mxu0
        %v1618 = vpop.f32.mrb[0].mxu0
        %1619 = vdwg.mxu0
        %1620 = vrot.lane.b32.xlu0 %v897, 48
        %v1621 = vpop.permute.xlu0 %1620
        %v1623 = vsel %vm901, %v1571, 0
        %v1626 = vsel %vm1030, %v1621, 0
        %1628 = vmatprep.subr.bf16.mxu0 0
        %1629 = vmatpush1.bf16.msra.mxu0 %v1626
        %1630 = vmatprep.subr.bf16.mxu0 0
        %1631 = vmatpush1.bf16.msra.mxu0 0
        %1632 = vmatprep.subr.bf16.mxu0 0
        %1633 = vmatpush1.bf16.msra.mxu0 0
        %1634 = vmatprep.subr.bf16.mxu0 0
        %1635 = vmatpush1.bf16.msra.mxu0 0
        %1636 = vmatprep.subr.bf16.mxu0 0
        %1637 = vmatpush1.bf16.msra.mxu0 0
        %1638 = vmatprep.subr.bf16.mxu0 0
        %1639 = vmatpush1.bf16.msra.mxu0 0
        %1640 = vmatprep.subr.bf16.mxu0 0
        %1641 = vmatpush1.bf16.msra.mxu0 0
        %1642 = vmatprep.subr.bf16.mxu0 0
        %1643 = vmatpush1.bf16.msra.mxu0 0
        %1644 = vmatprep.subr.bf16.mxu0 0
        %1645 = vmatpush1.bf16.msra.mxu0 0
        %1646 = vmatprep.subr.bf16.mxu0 0
        %1647 = vmatpush1.bf16.msra.mxu0 0
        %1648 = vmatprep.subr.bf16.mxu0 0
        %1649 = vmatpush1.bf16.msra.mxu0 0
        %1650 = vmatprep.subr.bf16.mxu0 0
        %1651 = vmatpush1.bf16.msra.mxu0 0
        %1652 = vmatprep.subr.bf16.mxu0 0
        %1653 = vmatpush1.bf16.msra.mxu0 0
        %1654 = vmatprep.subr.bf16.mxu0 0
        %1655 = vmatpush1.bf16.msra.mxu0 0
        %1656 = vmatprep.subr.bf16.mxu0 0
        %1657 = vmatpush1.bf16.msra.mxu0 0
        %1658 = vmatprep.subr.bf16.mxu0 0
        %1659 = vmatpush1.bf16.msra.mxu0 0
        %1660 = vmatprep.mubr.bf16.mxu0 0
        %1661 = vmatmul.mubr.bf16.gmra.mrb[0].mxu0 %v1623
        %v1662 = vpop.f32.mrb[0].mxu0
        %v1663 = vadd.f32 0.0, %v1662
        %v1664 = vpop.f32.mrb[0].mxu0
        %v1665 = vpop.f32.mrb[0].mxu0
        %v1666 = vpop.f32.mrb[0].mxu0
        %1667 = vdwg.mxu0
        %v1668 = vpack.c.bf16 %v1663, %v1615
        %v1669 = vpack.c.bf16 %v894, %v894
        %v1671 = vsel %vm901, %v1668, 0
        %v1674 = vsel %vm1030, %v1669, 0
        %1676 = vmatprep.subr.bf16.mxu0 0
        %1677 = vmatpush1.bf16.msra.mxu0 %v1674
        %1678 = vmatprep.subr.bf16.mxu0 0
        %1679 = vmatpush1.bf16.msra.mxu0 0
        %1680 = vmatprep.subr.bf16.mxu0 0
        %1681 = vmatpush1.bf16.msra.mxu0 0
        %1682 = vmatprep.subr.bf16.mxu0 0
        %1683 = vmatpush1.bf16.msra.mxu0 0
        %1684 = vmatprep.subr.bf16.mxu0 0
        %1685 = vmatpush1.bf16.msra.mxu0 0
        %1686 = vmatprep.subr.bf16.mxu0 0
        %1687 = vmatpush1.bf16.msra.mxu0 0
        %1688 = vmatprep.subr.bf16.mxu0 0
        %1689 = vmatpush1.bf16.msra.mxu0 0
        %1690 = vmatprep.subr.bf16.mxu0 0
        %1691 = vmatpush1.bf16.msra.mxu0 0
        %1692 = vmatprep.subr.bf16.mxu0 0
        %1693 = vmatpush1.bf16.msra.mxu0 0
        %1694 = vmatprep.subr.bf16.mxu0 0
        %1695 = vmatpush1.bf16.msra.mxu0 0
        %1696 = vmatprep.subr.bf16.mxu0 0
        %1697 = vmatpush1.bf16.msra.mxu0 0
        %1698 = vmatprep.subr.bf16.mxu0 0
        %1699 = vmatpush1.bf16.msra.mxu0 0
        %1700 = vmatprep.subr.bf16.mxu0 0
        %1701 = vmatpush1.bf16.msra.mxu0 0
        %1702 = vmatprep.subr.bf16.mxu0 0
        %1703 = vmatpush1.bf16.msra.mxu0 0
        %1704 = vmatprep.subr.bf16.mxu0 0
        %1705 = vmatpush1.bf16.msra.mxu0 0
        %1706 = vmatprep.subr.bf16.mxu0 0
        %1707 = vmatpush1.bf16.msra.mxu0 0
        %1708 = vmatprep.mubr.bf16.mxu0 0
        %1709 = vmatmul.mubr.bf16.gmra.mrb[0].mxu0 %v1671
        %v1710 = vpop.f32.mrb[0].mxu0
        %v1711 = vadd.f32 0.0, %v1710
        %v1712 = vpop.f32.mrb[0].mxu0
        %v1713 = vpop.f32.mrb[0].mxu0
        %v1714 = vadd.f32 0.0, %v1713
        %v1715 = vpop.f32.mrb[0].mxu0
        %1716 = vdwg.mxu0
        %v1717 = vadd.f32 %v1438, %v1711
        %v1718 = vadd.f32 %v1441, %v1714
        %1719 = vrot.lane.b32.xlu0 %v896, 104
        %v1720 = vpop.permute.xlu0 %1719
        %1721 = vrot.lane.b32.xlu0 %v896, 72
        %v1722 = vpop.permute.xlu0 %1721
        %v1724 = vsel %vm901, %v1720, 0
        %v1727 = vsel %vm901, %v1722, 0
        %1729 = vmatprep.subr.bf16.mxu0 0
        %1730 = vmatpush1.bf16.xpose.msra.mxu0 %v1727
        %1731 = vmatprep.subr.bf16.mxu0 0
        %1732 = vmatpush1.bf16.xpose.msra.mxu0 0
        %1733 = vmatprep.subr.bf16.mxu0 0
        %1734 = vmatpush1.bf16.xpose.msra.mxu0 0
        %1735 = vmatprep.subr.bf16.mxu0 0
        %1736 = vmatpush1.bf16.xpose.msra.mxu0 0
        %1737 = vmatprep.subr.bf16.mxu0 0
        %1738 = vmatpush1.bf16.xpose.msra.mxu0 0
        %1739 = vmatprep.subr.bf16.mxu0 0
        %1740 = vmatpush1.bf16.xpose.msra.mxu0 0
        %1741 = vmatprep.subr.bf16.mxu0 0
        %1742 = vmatpush1.bf16.xpose.msra.mxu0 0
        %1743 = vmatprep.subr.bf16.mxu0 0
        %1744 = vmatpush1.bf16.xpose.msra.mxu0 0
        %1745 = vmatprep.subr.bf16.mxu0 0
        %1746 = vmatpush1.bf16.xpose.msra.mxu0 0
        %1747 = vmatprep.subr.bf16.mxu0 0
        %1748 = vmatpush1.bf16.xpose.msra.mxu0 0
        %1749 = vmatprep.subr.bf16.mxu0 0
        %1750 = vmatpush1.bf16.xpose.msra.mxu0 0
        %1751 = vmatprep.subr.bf16.mxu0 0
        %1752 = vmatpush1.bf16.xpose.msra.mxu0 0
        %1753 = vmatprep.subr.bf16.mxu0 0
        %1754 = vmatpush1.bf16.xpose.msra.mxu0 0
        %1755 = vmatprep.subr.bf16.mxu0 0
        %1756 = vmatpush1.bf16.xpose.msra.mxu0 0
        %1757 = vmatprep.subr.bf16.mxu0 0
        %1758 = vmatpush1.bf16.xpose.msra.mxu0 0
        %1759 = vmatprep.subr.bf16.mxu0 0
        %1760 = vmatpush1.bf16.xpose.msra.mxu0 0
        %1761 = vmatprep.mubr.bf16.mxu0 0
        %1762 = vmatmul.mubr.bf16.gmra.mrb[0].mxu0 %v1724
        %v1763 = vpop.f32.mrb[0].mxu0
        %v1764 = vadd.f32 0.0, %v1763
        %v1765 = vpop.f32.mrb[0].mxu0
        %v1766 = vpop.f32.mrb[0].mxu0
        %v1767 = vpop.f32.mrb[0].mxu0
        %1768 = vdwg.mxu0
        %1769 = vrot.lane.b32.xlu0 %v897, 104
        %v1770 = vpop.permute.xlu0 %1769
        %1771 = vrot.lane.b32.xlu0 %v897, 72
        %v1772 = vpop.permute.xlu0 %1771
        %v1774 = vsel %vm901, %v1770, 0
        %v1777 = vsel %vm901, %v1772, 0
        %1779 = vmatprep.subr.bf16.mxu0 0
        %1780 = vmatpush1.bf16.xpose.msra.mxu0 %v1777
        %1781 = vmatprep.subr.bf16.mxu0 0
        %1782 = vmatpush1.bf16.xpose.msra.mxu0 0
        %1783 = vmatprep.subr.bf16.mxu0 0
        %1784 = vmatpush1.bf16.xpose.msra.mxu0 0
        %1785 = vmatprep.subr.bf16.mxu0 0
        %1786 = vmatpush1.bf16.xpose.msra.mxu0 0
        %1787 = vmatprep.subr.bf16.mxu0 0
        %1788 = vmatpush1.bf16.xpose.msra.mxu0 0
        %1789 = vmatprep.subr.bf16.mxu0 0
        %1790 = vmatpush1.bf16.xpose.msra.mxu0 0
        %1791 = vmatprep.subr.bf16.mxu0 0
        %1792 = vmatpush1.bf16.xpose.msra.mxu0 0
        %1793 = vmatprep.subr.bf16.mxu0 0
        %1794 = vmatpush1.bf16.xpose.msra.mxu0 0
        %1795 = vmatprep.subr.bf16.mxu0 0
        %1796 = vmatpush1.bf16.xpose.msra.mxu0 0
        %1797 = vmatprep.subr.bf16.mxu0 0
        %1798 = vmatpush1.bf16.xpose.msra.mxu0 0
        %1799 = vmatprep.subr.bf16.mxu0 0
        %1800 = vmatpush1.bf16.xpose.msra.mxu0 0
        %1801 = vmatprep.subr.bf16.mxu0 0
        %1802 = vmatpush1.bf16.xpose.msra.mxu0 0
        %1803 = vmatprep.subr.bf16.mxu0 0
        %1804 = vmatpush1.bf16.xpose.msra.mxu0 0
        %1805 = vmatprep.subr.bf16.mxu0 0
        %1806 = vmatpush1.bf16.xpose.msra.mxu0 0
        %1807 = vmatprep.subr.bf16.mxu0 0
        %1808 = vmatpush1.bf16.xpose.msra.mxu0 0
        %1809 = vmatprep.subr.bf16.mxu0 0
        %1810 = vmatpush1.bf16.xpose.msra.mxu0 0
        %1811 = vmatprep.mubr.bf16.mxu0 0
        %1812 = vmatmul.mubr.bf16.gmra.mrb[0].mxu0 %v1774
        %v1813 = vpop.f32.mrb[0].mxu0
        %v1814 = vadd.f32 0.0, %v1813
        %v1815 = vpop.f32.mrb[0].mxu0
        %v1816 = vpop.f32.mrb[0].mxu0
        %v1817 = vpop.f32.mrb[0].mxu0
        %1818 = vdwg.mxu0
        %v1819 = vmul.f32 %v1764, 0.35355338
        %v1820 = vmul.f32 %v1814, 0.35355338
        %v1821 = vadd.f32 %v1819, %v890
        %v1822 = vadd.f32 %v1820, %v891
        %v1823 = vsel %vm901, %v1821, -inf
        %1824 = vmax.xlane.f32.xlu0 %v1823
        %v1825 = vpop.xlane.xlu0 %1824
        %v1826 = vsel %vm901, %v1822, -inf
        %1827 = vmax.xlane.f32.xlu0 %v1826
        %v1828 = vpop.xlane.xlu0 %1827
        %v1829 = vsub.f32 %v1821, %v1825
        %v1830 = vsub.f32 %v1822, %v1828
        %v1831 = vmul.f32 %v1829, 1.442695
        %v1832 = vpow.pop %v1831
        %v1833 = vmul.f32 %v1830, 1.442695
        %v1834 = vpow.pop %v1833
        %v1835 = vsel %vm901, %v1832, 0.0
        %1836 = vadd.xlane.f32.xlu0 %v1835
        %v1837 = vpop.xlane.xlu0 %1836
        %v1838 = vsel %vm901, %v1834, 0.0
        %1839 = vadd.xlane.f32.xlu0 %v1838
        %v1840 = vpop.xlane.xlu0 %1839
        %v1841 = vrcp.pop %v1837
        %v1842 = vrcp.pop %v1840
        %v1843 = vmul.f32 %v1832, %v1841
        %v1844 = vmul.f32 %v1834, %v1842
        %v1845 = vpack.c.bf16 %v1843, %v1843
        %v1846 = vpack.c.bf16 %v1844, %v1844
        %1847 = vrot.lane.b32.xlu0 %v896, 40
        %v1848 = vpop.permute.xlu0 %1847
        %v1850 = vsel %vm901, %v1845, 0
        %v1853 = vsel %vm1030, %v1848, 0
        %1855 = vmatprep.subr.bf16.mxu0 0
        %1856 = vmatpush1.bf16.msra.mxu0 %v1853
        %1857 = vmatprep.subr.bf16.mxu0 0
        %1858 = vmatpush1.bf16.msra.mxu0 0
        %1859 = vmatprep.subr.bf16.mxu0 0
        %1860 = vmatpush1.bf16.msra.mxu0 0
        %1861 = vmatprep.subr.bf16.mxu0 0
        %1862 = vmatpush1.bf16.msra.mxu0 0
        %1863 = vmatprep.subr.bf16.mxu0 0
        %1864 = vmatpush1.bf16.msra.mxu0 0
        %1865 = vmatprep.subr.bf16.mxu0 0
        %1866 = vmatpush1.bf16.msra.mxu0 0
        %1867 = vmatprep.subr.bf16.mxu0 0
        %1868 = vmatpush1.bf16.msra.mxu0 0
        %1869 = vmatprep.subr.bf16.mxu0 0
        %1870 = vmatpush1.bf16.msra.mxu0 0
        %1871 = vmatprep.subr.bf16.mxu0 0
        %1872 = vmatpush1.bf16.msra.mxu0 0
        %1873 = vmatprep.subr.bf16.mxu0 0
        %1874 = vmatpush1.bf16.msra.mxu0 0
        %1875 = vmatprep.subr.bf16.mxu0 0
        %1876 = vmatpush1.bf16.msra.mxu0 0
        %1877 = vmatprep.subr.bf16.mxu0 0
        %1878 = vmatpush1.bf16.msra.mxu0 0
        %1879 = vmatprep.subr.bf16.mxu0 0
        %1880 = vmatpush1.bf16.msra.mxu0 0
        %1881 = vmatprep.subr.bf16.mxu0 0
        %1882 = vmatpush1.bf16.msra.mxu0 0
        %1883 = vmatprep.subr.bf16.mxu0 0
        %1884 = vmatpush1.bf16.msra.mxu0 0
        %1885 = vmatprep.subr.bf16.mxu0 0
        %1886 = vmatpush1.bf16.msra.mxu0 0
        %1887 = vmatprep.mubr.bf16.mxu0 0
        %1888 = vmatmul.mubr.bf16.gmra.mrb[0].mxu0 %v1850
        %v1889 = vpop.f32.mrb[0].mxu0
        %v1890 = vadd.f32 0.0, %v1889
        %v1891 = vpop.f32.mrb[0].mxu0
        %v1892 = vpop.f32.mrb[0].mxu0
        %v1893 = vpop.f32.mrb[0].mxu0
        %1894 = vdwg.mxu0
        %1895 = vrot.lane.b32.xlu0 %v897, 40
        %v1896 = vpop.permute.xlu0 %1895
        %v1898 = vsel %vm901, %v1846, 0
        %v1901 = vsel %vm1030, %v1896, 0
        %1903 = vmatprep.subr.bf16.mxu0 0
        %1904 = vmatpush1.bf16.msra.mxu0 %v1901
        %1905 = vmatprep.subr.bf16.mxu0 0
        %1906 = vmatpush1.bf16.msra.mxu0 0
        %1907 = vmatprep.subr.bf16.mxu0 0
        %1908 = vmatpush1.bf16.msra.mxu0 0
        %1909 = vmatprep.subr.bf16.mxu0 0
        %1910 = vmatpush1.bf16.msra.mxu0 0
        %1911 = vmatprep.subr.bf16.mxu0 0
        %1912 = vmatpush1.bf16.msra.mxu0 0
        %1913 = vmatprep.subr.bf16.mxu0 0
        %1914 = vmatpush1.bf16.msra.mxu0 0
        %1915 = vmatprep.subr.bf16.mxu0 0
        %1916 = vmatpush1.bf16.msra.mxu0 0
        %1917 = vmatprep.subr.bf16.mxu0 0
        %1918 = vmatpush1.bf16.msra.mxu0 0
        %1919 = vmatprep.subr.bf16.mxu0 0
        %1920 = vmatpush1.bf16.msra.mxu0 0
        %1921 = vmatprep.subr.bf16.mxu0 0
        %1922 = vmatpush1.bf16.msra.mxu0 0
        %1923 = vmatprep.subr.bf16.mxu0 0
        %1924 = vmatpush1.bf16.msra.mxu0 0
        %1925 = vmatprep.subr.bf16.mxu0 0
        %1926 = vmatpush1.bf16.msra.mxu0 0
        %1927 = vmatprep.subr.bf16.mxu0 0
        %1928 = vmatpush1.bf16.msra.mxu0 0
        %1929 = vmatprep.subr.bf16.mxu0 0
        %1930 = vmatpush1.bf16.msra.mxu0 0
        %1931 = vmatprep.subr.bf16.mxu0 0
        %1932 = vmatpush1.bf16.msra.mxu0 0
        %1933 = vmatprep.subr.bf16.mxu0 0
        %1934 = vmatpush1.bf16.msra.mxu0 0
        %1935 = vmatprep.mubr.bf16.mxu0 0
        %1936 = vmatmul.mubr.bf16.gmra.mrb[0].mxu0 %v1898
        %v1937 = vpop.f32.mrb[0].mxu0
        %v1938 = vadd.f32 0.0, %v1937
        %v1939 = vpop.f32.mrb[0].mxu0
        %v1940 = vpop.f32.mrb[0].mxu0
        %v1941 = vpop.f32.mrb[0].mxu0
        %1942 = vdwg.mxu0
        %v1943 = vpack.c.bf16 %v1938, %v1890
        %v1944 = vpack.c.bf16 %v895, %v895
        %v1946 = vsel %vm901, %v1943, 0
        %v1949 = vsel %vm1030, %v1944, 0
        %1951 = vmatprep.subr.bf16.mxu0 0
        %1952 = vmatpush1.bf16.msra.mxu0 %v1949
        %1953 = vmatprep.subr.bf16.mxu0 0
        %1954 = vmatpush1.bf16.msra.mxu0 0
        %1955 = vmatprep.subr.bf16.mxu0 0
        %1956 = vmatpush1.bf16.msra.mxu0 0
        %1957 = vmatprep.subr.bf16.mxu0 0
        %1958 = vmatpush1.bf16.msra.mxu0 0
        %1959 = vmatprep.subr.bf16.mxu0 0
        %1960 = vmatpush1.bf16.msra.mxu0 0
        %1961 = vmatprep.subr.bf16.mxu0 0
        %1962 = vmatpush1.bf16.msra.mxu0 0
        %1963 = vmatprep.subr.bf16.mxu0 0
        %1964 = vmatpush1.bf16.msra.mxu0 0
        %1965 = vmatprep.subr.bf16.mxu0 0
        %1966 = vmatpush1.bf16.msra.mxu0 0
        %1967 = vmatprep.subr.bf16.mxu0 0
        %1968 = vmatpush1.bf16.msra.mxu0 0
        %1969 = vmatprep.subr.bf16.mxu0 0
        %1970 = vmatpush1.bf16.msra.mxu0 0
        %1971 = vmatprep.subr.bf16.mxu0 0
        %1972 = vmatpush1.bf16.msra.mxu0 0
        %1973 = vmatprep.subr.bf16.mxu0 0
        %1974 = vmatpush1.bf16.msra.mxu0 0
        %1975 = vmatprep.subr.bf16.mxu0 0
        %1976 = vmatpush1.bf16.msra.mxu0 0
        %1977 = vmatprep.subr.bf16.mxu0 0
        %1978 = vmatpush1.bf16.msra.mxu0 0
        %1979 = vmatprep.subr.bf16.mxu0 0
        %1980 = vmatpush1.bf16.msra.mxu0 0
        %1981 = vmatprep.subr.bf16.mxu0 0
        %1982 = vmatpush1.bf16.msra.mxu0 0
        %1983 = vmatprep.mubr.bf16.mxu0 0
        %1984 = vmatmul.mubr.bf16.gmra.mrb[0].mxu0 %v1946
        %v1985 = vpop.f32.mrb[0].mxu0
        %v1986 = vadd.f32 0.0, %v1985
        %v1987 = vpop.f32.mrb[0].mxu0
        %v1988 = vpop.f32.mrb[0].mxu0
        %v1989 = vadd.f32 0.0, %v1988
        %v1990 = vpop.f32.mrb[0].mxu0
        %1991 = vdwg.mxu0
        %v1992 = vadd.f32 %v1717, %v1986
        %v1993 = vadd.f32 %v1718, %v1989
        %v1994 = vadd.f32 %v744, %v1992
        %v1995 = vadd.f32 %v745, %v1993
        %v1996 = vld [vmem:[%s711] sm:$0x1]
        %v1998 = vlaneseq
        %v1999 = vshrl.u32 %v1998, 7
        %v2000 = vsub.s32 0, %v1999
        %v2001 = vrot.slane %v1996, %v2000
        %v2003 = vadd.f32 %v1994, %v2001
        %v2004 = vadd.f32 %v1995, %v2001
        %v2005 = vld [vmem:[%s714] sm:$0x1]
        %v2006 = vld [vmem:[%s717] sm:$0x1]
        %v2007 = vsel %vm748, %v2003, 0.0
        %2008 = vadd.xlane.f32.xlu0 %v2007
        %v2009 = vpop.xlane.xlu0 %2008
        %v2010 = vsel %vm748, %v2004, 0.0
        %2011 = vadd.xlane.f32.xlu0 %v2010
        %v2012 = vpop.xlane.xlu0 %2011
        %v2013 = vmul.f32 %v2009, %v755
        %v2014 = vmul.f32 %v2012, %v755
        %v2015 = vsub.f32 %v2003, %v2013
        %v2016 = vsub.f32 %v2004, %v2014
        %v2017 = vmul.f32 %v2015, %v2015
        %v2018 = vmul.f32 %v2016, %v2016
        %v2019 = vsel %vm748, %v2017, 0.0
        %2020 = vadd.xlane.f32.xlu0 %v2019
        %v2021 = vpop.xlane.xlu0 %2020
        %v2022 = vsel %vm748, %v2018, 0.0
        %2023 = vadd.xlane.f32.xlu0 %v2022
        %v2024 = vpop.xlane.xlu0 %2023
        %v2025 = vmul.f32 %v2021, %v755
        %v2026 = vmul.f32 %v2024, %v755
        %v2027 = vadd.f32 %v2025, 1e-05
        %v2028 = vadd.f32 %v2026, 1e-05
        %v2029 = vrsqrt.pop %v2027
        %v2030 = vrsqrt.pop %v2028
        %v2031 = vmul.f32 %v2015, %v2029
        %v2032 = vmul.f32 %v2016, %v2030
        %v2034 = vlaneseq
        %v2035 = vshrl.u32 %v2034, 7
        %v2036 = vsub.s32 0, %v2035
        %v2037 = vrot.slane %v2005, %v2036
        %v2039 = vmul.f32 %v2031, %v2037
        %v2040 = vmul.f32 %v2032, %v2037
        %v2042 = vlaneseq
        %v2043 = vshrl.u32 %v2042, 7
        %v2044 = vsub.s32 0, %v2043
        %v2045 = vrot.slane %v2006, %v2044
        %v2047 = vadd.f32 %v2039, %v2045
        %v2048 = vadd.f32 %v2040, %v2045
        %v2049 = vld [vmem:[%s722] sm:$0xff]
        %v2050 = vld [vmem:[%s722 + $0x8] sm:$0xff]
        %v2051 = vld [vmem:[%s722 + $0x10] sm:$0xff]
        %v2052 = vld [vmem:[%s722 + $0x18] sm:$0xff]
        %v2053 = vpack.c.bf16 %v2048, %v2047
        %v2054 = vpack.c.bf16 %v2050, %v2049
        %v2055 = vpack.c.bf16 %v2052, %v2051
        %v2056 = vld [vmem:[%s725] sm:$0x1]
        %v2058 = vlaneseq
        %v2059 = vshrl.u32 %v2058, 7
        %v2060 = vsub.s32 0, %v2059
        %v2061 = vrot.slane %v2056, %v2060
        %v2064 = vsel %vm748, %v2053, 0
        %2066 = vmatprep.subr.bf16.mxu0 0
        %2067 = vmatpush1.bf16.msra.mxu0 %v2054
        %2068 = vmatprep.subr.bf16.mxu0 0
        %2069 = vmatpush1.bf16.msra.mxu0 %v2055
        %2070 = vmatprep.subr.bf16.mxu0 0
        %2071 = vmatpush1.bf16.msra.mxu0 0
        %2072 = vmatprep.subr.bf16.mxu0 0
        %2073 = vmatpush1.bf16.msra.mxu0 0
        %2074 = vmatprep.subr.bf16.mxu0 0
        %2075 = vmatpush1.bf16.msra.mxu0 0
        %2076 = vmatprep.subr.bf16.mxu0 0
        %2077 = vmatpush1.bf16.msra.mxu0 0
        %2078 = vmatprep.subr.bf16.mxu0 0
        %2079 = vmatpush1.bf16.msra.mxu0 0
        %2080 = vmatprep.subr.bf16.mxu0 0
        %2081 = vmatpush1.bf16.msra.mxu0 0
        %2082 = vmatprep.subr.bf16.mxu0 0
        %2083 = vmatpush1.bf16.msra.mxu0 0
        %2084 = vmatprep.subr.bf16.mxu0 0
        %2085 = vmatpush1.bf16.msra.mxu0 0
        %2086 = vmatprep.subr.bf16.mxu0 0
        %2087 = vmatpush1.bf16.msra.mxu0 0
        %2088 = vmatprep.subr.bf16.mxu0 0
        %2089 = vmatpush1.bf16.msra.mxu0 0
        %2090 = vmatprep.subr.bf16.mxu0 0
        %2091 = vmatpush1.bf16.msra.mxu0 0
        %2092 = vmatprep.subr.bf16.mxu0 0
        %2093 = vmatpush1.bf16.msra.mxu0 0
        %2094 = vmatprep.subr.bf16.mxu0 0
        %2095 = vmatpush1.bf16.msra.mxu0 0
        %2096 = vmatprep.subr.bf16.mxu0 0
        %2097 = vmatpush1.bf16.msra.mxu0 0
        %2098 = vmatprep.mubr.bf16.mxu0 0
        %2099 = vmatmul.mubr.bf16.gmra.mrb[0].mxu0 %v2064
        %v2100 = vpop.f32.mrb[0].mxu0
        %v2101 = vadd.f32 %v2061, %v2100
        %v2102 = vpop.f32.mrb[0].mxu0
        %v2103 = vpop.f32.mrb[0].mxu0
        %v2104 = vadd.f32 %v2061, %v2103
        %v2105 = vpop.f32.mrb[0].mxu0
        %2106 = vdwg.mxu0
        %v2107 = vmul.f32 %v2101, 1.702
        %v2108 = vmul.f32 %v2104, 1.702
        %v2109 = vxor.u32 %v2107, 2147483648
        %v2110 = vxor.u32 %v2108, 2147483648
        %v2111 = vmul.f32 %v2109, 1.442695
        %v2112 = vpow.pop %v2111
        %v2113 = vmul.f32 %v2110, 1.442695
        %v2114 = vpow.pop %v2113
        %v2115 = vadd.f32 %v2112, 1.0
        %v2116 = vadd.f32 %v2114, 1.0
        %v2117 = vrcp.pop %v2115
        %v2118 = vmul.f32 1.0, %v2117
        %v2119 = vrcp.pop %v2116
        %v2120 = vmul.f32 1.0, %v2119
        %v2121 = vmul.f32 %v2101, %v2118
        %v2122 = vmul.f32 %v2104, %v2120
        %v2123 = vld [vmem:[%s730] sm:$0xff]
        %v2124 = vld [vmem:[%s730 + $0x8] sm:$0xff]
        %v2125 = vld [vmem:[%s730 + $0x10] sm:$0xff]
        %v2126 = vld [vmem:[%s730 + $0x18] sm:$0xff]
        %v2127 = vld [vmem:[%s730 + $0x20] sm:$0xff]
        %v2128 = vld [vmem:[%s730 + $0x28] sm:$0xff]
        %v2129 = vld [vmem:[%s730 + $0x30] sm:$0xff]
        %v2130 = vld [vmem:[%s730 + $0x38] sm:$0xff]
        %v2131 = vld [vmem:[%s730 + $0x40] sm:$0xff]
        %v2132 = vld [vmem:[%s730 + $0x48] sm:$0xff]
        %v2133 = vld [vmem:[%s730 + $0x50] sm:$0xff]
        %v2134 = vld [vmem:[%s730 + $0x58] sm:$0xff]
        %v2135 = vld [vmem:[%s730 + $0x60] sm:$0xff]
        %v2136 = vld [vmem:[%s730 + $0x68] sm:$0xff]
        %v2137 = vld [vmem:[%s730 + $0x70] sm:$0xff]
        %v2138 = vld [vmem:[%s730 + $0x78] sm:$0xff]
        %v2139 = vpack.c.bf16 %v2122, %v2121
        %v2140 = vpack.c.bf16 %v2124, %v2123
        %v2141 = vpack.c.bf16 %v2126, %v2125
        %v2142 = vpack.c.bf16 %v2128, %v2127
        %v2143 = vpack.c.bf16 %v2130, %v2129
        %v2144 = vpack.c.bf16 %v2132, %v2131
        %v2145 = vpack.c.bf16 %v2134, %v2133
        %v2146 = vpack.c.bf16 %v2136, %v2135
        %v2147 = vpack.c.bf16 %v2138, %v2137
        %v2148 = vld [vmem:[%s733] sm:$0x1]
        %v2150 = vlaneseq
        %v2151 = vshrl.u32 %v2150, 7
        %v2152 = vsub.s32 0, %v2151
        %v2153 = vrot.slane %v2148, %v2152
        %2155 = vmatprep.subr.bf16.mxu0 0
        %2156 = vmatpush1.bf16.msra.mxu0 %v2140
        %2157 = vmatprep.subr.bf16.mxu0 0
        %2158 = vmatpush1.bf16.msra.mxu0 %v2141
        %2159 = vmatprep.subr.bf16.mxu0 0
        %2160 = vmatpush1.bf16.msra.mxu0 %v2142
        %2161 = vmatprep.subr.bf16.mxu0 0
        %2162 = vmatpush1.bf16.msra.mxu0 %v2143
        %2163 = vmatprep.subr.bf16.mxu0 0
        %2164 = vmatpush1.bf16.msra.mxu0 %v2144
        %2165 = vmatprep.subr.bf16.mxu0 0
        %2166 = vmatpush1.bf16.msra.mxu0 %v2145
        %2167 = vmatprep.subr.bf16.mxu0 0
        %2168 = vmatpush1.bf16.msra.mxu0 %v2146
        %2169 = vmatprep.subr.bf16.mxu0 0
        %2170 = vmatpush1.bf16.msra.mxu0 %v2147
        %2171 = vmatprep.subr.bf16.mxu0 0
        %2172 = vmatpush1.bf16.msra.mxu0 0
        %2173 = vmatprep.subr.bf16.mxu0 0
        %2174 = vmatpush1.bf16.msra.mxu0 0
        %2175 = vmatprep.subr.bf16.mxu0 0
        %2176 = vmatpush1.bf16.msra.mxu0 0
        %2177 = vmatprep.subr.bf16.mxu0 0
        %2178 = vmatpush1.bf16.msra.mxu0 0
        %2179 = vmatprep.subr.bf16.mxu0 0
        %2180 = vmatpush1.bf16.msra.mxu0 0
        %2181 = vmatprep.subr.bf16.mxu0 0
        %2182 = vmatpush1.bf16.msra.mxu0 0
        %2183 = vmatprep.subr.bf16.mxu0 0
        %2184 = vmatpush1.bf16.msra.mxu0 0
        %2185 = vmatprep.subr.bf16.mxu0 0
        %2186 = vmatpush1.bf16.msra.mxu0 0
        %2187 = vmatprep.mubr.bf16.mxu0 0
        %2188 = vmatmul.mubr.bf16.gmra.mrb[0].mxu0 %v2139
        %v2189 = vpop.f32.mrb[0].mxu0
        %v2190 = vadd.f32 %v2153, %v2189
        %v2191 = vpop.f32.mrb[0].mxu0
        %v2192 = vpop.f32.mrb[0].mxu0
        %v2193 = vadd.f32 %v2153, %v2192
        %v2194 = vpop.f32.mrb[0].mxu0
        %2195 = vdwg.mxu0
        %v2196 = vadd.f32 %v2003, %v2190
        %v2197 = vadd.f32 %v2004, %v2193
        %2198 = vst.msk [vmem:[#allocation2] sm:$0xff] %vm748, %v2196
        %2199 = vst.msk [vmem:[#allocation2 + $0x8] sm:$0xff] %vm748, %v2197
        %p2200 = scmp.eq.s32.totalorder %s30, 1
        // Predicated region
        $region97: #{clip_text_features.1} parent=91 // pred_check
          %p2201 = pneg %p2200
        $region98: #{clip_text_features.1} parent=91 // pred_check_branch
          %2203 = sbr.rel (%p2201) target = $region100
        $region99: #{clip_text_features.1} parent=91 // pred_region
          %v2204 = vld [vmem:[%s2] sm:$0x3]
          %vm2205 = vcmask 130048
          %v2207 = vsel %vm2205, %v2204, 0
          %2209 = vmatprep.subr.mxu0 0.0
          %2210 = vmatpush1.msra.mxu0 %v2196
          %2211 = vmatprep.subr.mxu0 0.0
          %2212 = vmatpush1.msra.mxu0 %v2197
          %2213 = vmatprep.subr.mxu0 0.0
          %2214 = vmatpush1.msra.mxu0 0.0
          %2215 = vmatprep.subr.mxu0 0.0
          %2216 = vmatpush1.msra.mxu0 0.0
          %2217 = vmatprep.subr.mxu0 0.0
          %2218 = vmatpush1.msra.mxu0 0.0
          %2219 = vmatprep.subr.mxu0 0.0
          %2220 = vmatpush1.msra.mxu0 0.0
          %2221 = vmatprep.subr.mxu0 0.0
          %2222 = vmatpush1.msra.mxu0 0.0
          %2223 = vmatprep.subr.mxu0 0.0
          %2224 = vmatpush1.msra.mxu0 0.0
          %2225 = vmatprep.subr.mxu0 0.0
          %2226 = vmatpush1.msra.mxu0 0.0
          %2227 = vmatprep.subr.mxu0 0.0
          %2228 = vmatpush1.msra.mxu0 0.0
          %2229 = vmatprep.subr.mxu0 0.0
          %2230 = vmatpush1.msra.mxu0 0.0
          %2231 = vmatprep.subr.mxu0 0.0
          %2232 = vmatpush1.msra.mxu0 0.0
          %2233 = vmatprep.subr.mxu0 0.0
          %2234 = vmatpush1.msra.mxu0 0.0
          %2235 = vmatprep.subr.mxu0 0.0
          %2236 = vmatpush1.msra.mxu0 0.0
          %2237 = vmatprep.subr.mxu0 0.0
          %2238 = vmatpush1.msra.mxu0 0.0
          %2239 = vmatprep.subr.mxu0 0.0
          %2240 = vmatpush1.msra.mxu0 0.0
          %2241 = vmatprep.subr.mxu0 0.0
          %2242 = vmatpush1.msra.mxu0 0.0
          %2243 = vmatprep.subr.mxu0 0.0
          %2244 = vmatpush1.msra.mxu0 0.0
          %2245 = vmatprep.subr.mxu0 0.0
          %2246 = vmatpush1.msra.mxu0 0.0
          %2247 = vmatprep.subr.mxu0 0.0
          %2248 = vmatpush1.msra.mxu0 0.0
          %2249 = vmatprep.subr.mxu0 0.0
          %2250 = vmatpush1.msra.mxu0 0.0
          %2251 = vmatprep.subr.mxu0 0.0
          %2252 = vmatpush1.msra.mxu0 0.0
          %2253 = vmatprep.subr.mxu0 0.0
          %2254 = vmatpush1.msra.mxu0 0.0
          %2255 = vmatprep.subr.mxu0 0.0
          %2256 = vmatpush1.msra.mxu0 0.0
          %2257 = vmatprep.subr.mxu0 0.0
          %2258 = vmatpush1.msra.mxu0 0.0
          %2259 = vmatprep.subr.mxu0 0.0
          %2260 = vmatpush1.msra.mxu0 0.0
          %2261 = vmatprep.subr.mxu0 0.0
          %2262 = vmatpush1.msra.mxu0 0.0
          %2263 = vmatprep.subr.mxu0 0.0
          %2264 = vmatpush1.msra.mxu0 0.0
          %2265 = vmatprep.subr.mxu0 0.0
          %2266 = vmatpush1.msra.mxu0 0.0
          %2267 = vmatprep.subr.mxu0 0.0
          %2268 = vmatpush1.msra.mxu0 0.0
          %2269 = vmatprep.subr.mxu0 0.0
          %2270 = vmatpush1.msra.mxu0 0.0
          %2271 = vmatprep.subr.mxu0 0.0
          %2272 = vmatpush1.msra.mxu0 0.0
          %2273 = vmatprep.mubr.f32.mxu0 0.0
          %2274 = vmatmul.mubr.f32.gmra.mrb[0].mxu0 %v2207
          %v2275 = vpop.f32.mrb[0].mxu0
          %v2276 = vadd.f32 0.0, %v2275
          %v2277 = vpop.f32.mrb[0].mxu0
          %2278 = vdwg.mxu0
          %v2279 = vld [vmem:[%s15] sm:$0x1]
          %v2280 = vld [vmem:[%s16] sm:$0x1]
          %vm2281 = vcmask 254976
          %v2282 = vsel %vm2281, %v2276, 0.0
          %2283 = vadd.xlane.f32.xlu0 %v2282
          %v2284 = vpop.xlane.xlu0 %2283
          %v2285 = vmul.f32 %v2284, %v755
          %v2286 = vsub.f32 %v2276, %v2285
          %v2287 = vmul.f32 %v2286, %v2286
          %v2288 = vsel %vm2281, %v2287, 0.0
          %2289 = vadd.xlane.f32.xlu0 %v2288
          %v2290 = vpop.xlane.xlu0 %2289
          %v2291 = vmul.f32 %v2290, %v755
          %v2292 = vadd.f32 %v2291, 1e-05
          %v2293 = vrsqrt.pop %v2292
          %v2294 = vmul.f32 %v2286, %v2293
          %v2296 = vlaneseq
          %v2297 = vshrl.u32 %v2296, 7
          %v2298 = vsub.s32 0, %v2297
          %v2299 = vrot.slane %v2279, %v2298
          %v2301 = vmul.f32 %v2294, %v2299
          %v2303 = vlaneseq
          %v2304 = vshrl.u32 %v2303, 7
          %v2305 = vsub.s32 0, %v2304
          %v2306 = vrot.slane %v2280, %v2305
          %v2308 = vadd.f32 %v2301, %v2306
          %v2309 = vpack.c.bf16 %v2308, %v2308
          %v2310 = vld [vmem:[%s17] sm:$0xff]
          %v2311 = vld [vmem:[%s17 + $0x8] sm:$0xff]
          %v2312 = vld [vmem:[%s17 + $0x10] sm:$0xff]
          %v2313 = vld [vmem:[%s17 + $0x18] sm:$0xff]
          %v2314 = vpack.c.bf16 %v2311, %v2310
          %v2315 = vpack.c.bf16 %v2313, %v2312
          %v2317 = vsel %vm748, %v2309, 0
          %2319 = vmatprep.subr.bf16.mxu0 0
          %2320 = vmatpush1.bf16.msra.mxu0 %v2314
          %2321 = vmatprep.subr.bf16.mxu0 0
          %2322 = vmatpush1.bf16.msra.mxu0 %v2315
          %2323 = vmatprep.subr.bf16.mxu0 0
          %2324 = vmatpush1.bf16.msra.mxu0 0
          %2325 = vmatprep.subr.bf16.mxu0 0
          %2326 = vmatpush1.bf16.msra.mxu0 0
          %2327 = vmatprep.subr.bf16.mxu0 0
          %2328 = vmatpush1.bf16.msra.mxu0 0
          %2329 = vmatprep.subr.bf16.mxu0 0
          %2330 = vmatpush1.bf16.msra.mxu0 0
          %2331 = vmatprep.subr.bf16.mxu0 0
          %2332 = vmatpush1.bf16.msra.mxu0 0
          %2333 = vmatprep.subr.bf16.mxu0 0
          %2334 = vmatpush1.bf16.msra.mxu0 0
          %2335 = vmatprep.subr.bf16.mxu0 0
          %2336 = vmatpush1.bf16.msra.mxu0 0
          %2337 = vmatprep.subr.bf16.mxu0 0
          %2338 = vmatpush1.bf16.msra.mxu0 0
          %2339 = vmatprep.subr.bf16.mxu0 0
          %2340 = vmatpush1.bf16.msra.mxu0 0
          %2341 = vmatprep.subr.bf16.mxu0 0
          %2342 = vmatpush1.bf16.msra.mxu0 0
          %2343 = vmatprep.subr.bf16.mxu0 0
          %2344 = vmatpush1.bf16.msra.mxu0 0
          %2345 = vmatprep.subr.bf16.mxu0 0
          %2346 = vmatpush1.bf16.msra.mxu0 0
          %2347 = vmatprep.subr.bf16.mxu0 0
          %2348 = vmatpush1.bf16.msra.mxu0 0
          %2349 = vmatprep.subr.bf16.mxu0 0
          %2350 = vmatpush1.bf16.msra.mxu0 0
          %2351 = vmatprep.mubr.bf16.mxu0 0
          %2352 = vmatmul.mubr.bf16.gmra.mrb[0].mxu0 %v2317
          %v2353 = vpop.f32.mrb[0].mxu0
          %v2354 = vadd.f32 0.0, %v2353
          %v2355 = vpop.f32.mrb[0].mxu0
          %v2356 = vpop.f32.mrb[0].mxu0
          %v2357 = vpop.f32.mrb[0].mxu0
          %2358 = vdwg.mxu0
          %vm2359 = vcmask 123904
          %2360 = vst.msk [vmem:[#allocation3] sm:$0x3] %vm2359, %v2354
        $region100: #{clip_text_features.1} parent=91 // pred_fallthru
          _
        // Predicated region
        $region101: #{clip_text_features.1} parent=91 // pred_check
          %p2361 = pneg %p481
        $region102: #{clip_text_features.1} parent=91 // pred_check_branch
          %2363 = sbr.rel (%p2361) target = $region104
        $region103: #{clip_text_features.1} parent=91 // pred_region
          %s2365 = ssub.s32 32, 32
          %2366 = vsyncadd [#allocation4], %s2365
          %s2368 = sshll.u32 [#allocation3], 4
          %s2369 = int_to_ptr.vmem [resolvable:$true] %s2368
          %2371 = dma.vmem_to_hbm [thread:$0]  %s2369, 32, %s18, [#allocation4]
        $region104: #{clip_text_features.1} parent=91 // pred_fallthru
          _
        // Predicated region
        $region105: #{clip_text_features.1} parent=91 // pred_check
          %p2372 = pneg %p481
        $region106: #{clip_text_features.1} parent=91 // pred_check_branch
          %2374 = sbr.rel (%p2372) target = $region108
        $region107: #{clip_text_features.1} parent=91 // pred_region
          %2375 = dma.done [#allocation4], 32
        $region108: #{clip_text_features.1} parent=91 // pred_fallthru
          _
      $region92: #{clip_text_features.1} parent=5 // pred_fallthru
        _
      %p2376 = scmp.le.s32.totalorder 2, %s25
      // Predicated region
      $region109: #{clip_text_features.1} parent=5 // pred_check
        %p2377 = pneg %p2376
      $region110: #{clip_text_features.1} parent=5 // pred_check_branch
        %2379 = sbr.rel (%p2377) target = $region112
      $region111: #{clip_text_features.1} parent=5 // pred_region
        %s2380 = ssub.s32 %s25, 2
      $region112: #{clip_text_features.1} parent=5 // pred_fallthru
        _
    $region6: #{clip_text_features.1} parent=1 // loop_footer
      %s29 = sadd.s32 1, %s25
    $region7: #{clip_text_features.1} parent=1 // loop_footer_branch
      %24 = sbr.rel target = $region3
    $region8: #{clip_text_features.1} parent=1 // loop_exit
      _
    %2381 = vsyncpa [#allocation4], 1
    %s2382 = scalar_lea.sflag [#allocation4], 1
    %2383 = vsyncpa %s2382, 1

</llo_original>
